<compile_context>
chip_gen: v7x
topology: tpu7x:2x2x1
jax: 0.10.0
libtpu: 0.0.40
codegen_flags: <defaults>
</compile_context>

<pallas_src>
import functools

import jax
import jax.numpy as jnp
from jax import lax
from jax.experimental import pallas as pl
from jax.experimental.pallas import tpu as pltpu


def gru_full_kernel(x_ref, wi_ref, wh_ref, bx_ref, bhn_ref, wl_ref, bl_ref,
                    out_ref, gx_ref, hs_ref, *, T, B, G):
    """Whole GRU forward (+ head + clamp + min) in one kernel invocation.

    Gate-padded layout: G = round_up(H, 128); gate g lives in lanes
    [g*G, g*G + H) of every 3*G-wide operand, remaining lanes are zero.

    x_ref  : (T*B, I)   time-major-flattened inputs (row = t*B + b)
    wi_ref : (I, 3G)    [W_ir | W_iz | W_in], lane-padded per gate
    wh_ref : (G, 3G)    [W_hr | W_hz | W_hn], K padded to G, lane-padded per gate
    bx_ref : (1, 3G)    [b_ir+b_hr | b_iz+b_hz | b_in], lane-padded
    bhn_ref: (1, G)     b_hn, lane-padded
    wl_ref : (1, G)     Linear weight row (output_size = 1), lane-padded
    bl_ref : (1,)       Linear bias (SMEM scalar)
    out_ref: (T*B, I)   min(clamp(linear(h), 0), x)
    gx_ref : (T*B, 3G)  scratch: precomputed input-side gate pre-activations
    hs_ref : (T*B, G)   scratch: all hidden states (padded width -> unmasked stores)
    """
    # 1) Input projection for ALL time steps: one MXU GEMM with M = T*B.
    gx_ref[...] = (
        jnp.dot(x_ref[...], wi_ref[...], preferred_element_type=jnp.float32)
        + bx_ref[...]
    )

    wh = wh_ref[...]      # hoisted loads (loop-invariant)
    bhn = bhn_ref[...]

    # 2) Peeled first step: h0 == 0 => gh == 0, no hidden matmul needed.
    gx0 = gx_ref[pl.ds(0, B), :]                       # (B, 3G)
    rz0 = jax.nn.sigmoid(gx0[:, 0:2 * G])              # whole-vreg slices
    r0 = rz0[:, 0:G]
    z0 = rz0[:, G:2 * G]
    n0 = jnp.tanh(gx0[:, 2 * G:3 * G] + r0 * bhn)
    h1 = n0 - z0 * n0                                  # == (1 - z0) * n0
    hs_ref[pl.ds(0, B), :] = h1

    # 3) Serial recurrence t = 1..T-1: only the fused (B,G)@(G,3G) matmul plus
    #    in-lane gate math sit on the critical path; h carried in vregs.
    def step(t, h):
        base = pl.multiple_of(t * B, B)                # B == 8 -> sublane aligned
        gx_t = gx_ref[pl.ds(base, B), :]               # (B, 3G)
        gh = jnp.dot(h, wh, preferred_element_type=jnp.float32)   # (B, 3G)
        rz = jax.nn.sigmoid(gx_t[:, 0:2 * G] + gh[:, 0:2 * G])
        r = rz[:, 0:G]
        z = rz[:, G:2 * G]
        n = jnp.tanh(gx_t[:, 2 * G:3 * G] + r * (gh[:, 2 * G:3 * G] + bhn))
        h_new = n + z * (h - n)                        # == (1-z)*n + z*h
        hs_ref[pl.ds(base, B), :] = h_new              # full-vreg unmasked store
        return h_new

    lax.fori_loop(1, T, step, h1, unroll=True)

    # 4) Batched epilogue: Linear head (output_size = 1 -> lane reduction),
    #    clamp(min=0), broadcast-min against x. Off the serial path. Padded
    #    lanes of hs are zero and wl is zero there, so they contribute nothing.
    y = jnp.sum(hs_ref[...] * wl_ref[...], axis=1, keepdims=True) + bl_ref[0]
    pred = jnp.maximum(y, 0.0)                         # (T*B, 1)
    out_ref[...] = jnp.minimum(pred, x_ref[...])       # broadcast vs (T*B, I)
    # NOTE: out has I=16 lanes -> masked stores; noise at this size. If I or
    # B*I grows, present a lane-dense (T, B*I) output layout instead.


@jax.jit
def custom_rnn_forward(x_bti, params):
    """x_bti: (B, T, I) batch_first like the PyTorch module. Returns (B, T, I) f32."""
    B, T, I = x_bti.shape
    H = params["whr"].shape[0]
    G = ((H + 127) // 128) * 128        # per-gate lane-padded width
    f32 = jnp.float32

    # One-time weight packing into the lane-aligned gate layout.
    def place_gates(mats, rows):
        out = jnp.zeros((rows, 3 * G), f32)
        for g, m in enumerate(mats):
            out = out.at[:, g * G:g * G + H].set(m.astype(f32))
        return out

    wi_pad = place_gates([params["wir"], params["wiz"], params["win"]], I)    # (I, 3G)
    wh_pad = jnp.zeros((G, 3 * G), f32)                                       # (G, 3G)
    for g, m in enumerate([params["whr"], params["whz"], params["whn"]]):
        wh_pad = wh_pad.at[:H, g * G:g * G + H].set(m.astype(f32))
    bx_pad = place_gates([params["bir"] + params["bhr"],
                          params["biz"] + params["bhz"],
                          params["bin"]], 1)                                  # (1, 3G)
    bhn_pad = jnp.zeros((1, G), f32).at[:, :H].set(params["bhn"].astype(f32))
    wl_pad = jnp.zeros((1, G), f32).at[:, :H].set(
        params["wl"].reshape(1, H).astype(f32))
    bl = params["bl"].reshape((1,)).astype(f32)

    # Time-major flatten so the recurrence reads contiguous, sublane-aligned
    # (B, .) row blocks via leading-dim pl.ds. ~4 KiB here; at production T*B,
    # keep activations time-major end-to-end to avoid the extra HBM round trips.
    x_flat = jnp.transpose(x_bti, (1, 0, 2)).reshape(T * B, I).astype(f32)

    kernel = functools.partial(gru_full_kernel, T=T, B=B, G=G)
    vmem = pl.BlockSpec(memory_space=pltpu.MemorySpace.VMEM)
    smem = pl.BlockSpec(memory_space=pltpu.MemorySpace.SMEM)

    out_flat = pl.pallas_call(
        kernel,
        out_shape=jax.ShapeDtypeStruct((T * B, I), f32),
        in_specs=[vmem, vmem, vmem, vmem, vmem, vmem, smem],
        out_specs=vmem,
        scratch_shapes=[
            pltpu.VMEM((T * B, 3 * G), f32),   # precomputed input gates
            pltpu.VMEM((T * B, G), f32),       # all hidden states (padded width)
        ],
        compiler_params=pltpu.CompilerParams(
            # Explicit scoped-VMEM budget; scratch here is < 1 MiB. For long
            # sequences, chunk the time axis so these scratch buffers stay
            # well under ~48 MiB on v7x (64 MiB physical VMEM).
            vmem_limit_bytes=32 * 1024 * 1024,
        ),
    )(x_flat, wi_pad, wh_pad, bx_pad, bhn_pad, wl_pad, bl)

    return jnp.transpose(out_flat.reshape(T, B, I), (1, 0, 2))   # back to (B, T, I)


def init_params(key, input_size, hidden_size, output_size):
    """Deterministic init mimicking PyTorch's U(-1/sqrt(H), 1/sqrt(H))."""
    bound = 1.0 / jnp.sqrt(jnp.float32(hidden_size))
    names_shapes = [
        ("wir", (input_size, hidden_size)), ("wiz", (input_size, hidden_size)),
        ("win", (input_size, hidden_size)),
        ("whr", (hidden_size, hidden_size)), ("whz", (hidden_size, hidden_size)),
        ("whn", (hidden_size, hidden_size)),
        ("bir", (1, hidden_size)), ("biz", (1, hidden_size)), ("bin", (1, hidden_size)),
        ("bhr", (1, hidden_size)), ("bhz", (1, hidden_size)), ("bhn", (1, hidden_size)),
        ("wl", (hidden_size, output_size)), ("bl", (1, output_size)),
    ]
    params = {}
    keys = jax.random.split(key, len(names_shapes))
    for k, (name, shape) in zip(keys, names_shapes):
        params[name] = jax.random.uniform(k, shape, jnp.float32, -bound, bound)
    return params


def reference_forward(x, p):
    """Pure-JAX reference of the same semantics (sanity check)."""
    B, T, I = x.shape
    H = p["whr"].shape[0]

    def step(h, x_t):
        r = jax.nn.sigmoid(x_t @ p["wir"] + p["bir"] + h @ p["whr"] + p["bhr"])
        z = jax.nn.sigmoid(x_t @ p["wiz"] + p["biz"] + h @ p["whz"] + p["bhz"])
        n = jnp.tanh(x_t @ p["win"] + p["bin"] + r * (h @ p["whn"] + p["bhn"]))
        h_new = (1.0 - z) * n + z * h
        return h_new, h_new

    h0 = jnp.zeros((B, H), jnp.float32)
    _, hs = jax.lax.scan(step, h0, jnp.transpose(x, (1, 0, 2)))
    hs = jnp.transpose(hs, (1, 0, 2))           # (B, T, H)
    y = hs @ p["wl"] + p["bl"]                  # (B, T, 1)
    pred = jnp.maximum(y, 0.0)
    return jnp.minimum(pred, x)                 # (B, T, I)


if __name__ == "__main__":
    B, T, I, H, OUT = 8, 8, 16, 32, 1

    key = jax.random.PRNGKey(0)
    k_x, k_p = jax.random.split(key)
    x = jax.random.normal(k_x, (B, T, I), jnp.float32)
    params = init_params(k_p, I, H, OUT)

    out = custom_rnn_forward(x, params)
    out = jax.block_until_ready(out)

    ref = jax.block_until_ready(reference_forward(x, params))
    assert out.shape == (B, T, I)
    assert jnp.allclose(out, ref, atol=1e-4, rtol=1e-4)

    print("KERNEL_OK")
</pallas_src>

<mosaic_0001>
module attributes {stable_mosaic.version = 11 : i64} {
  func.func @gru_full_kernel(%arg0: memref<64x16xf32, #tpu.memory_space<vmem>>, %arg1: memref<16x384xf32, #tpu.memory_space<vmem>>, %arg2: memref<128x384xf32, #tpu.memory_space<vmem>>, %arg3: memref<1x384xf32, #tpu.memory_space<vmem>>, %arg4: memref<1x128xf32, #tpu.memory_space<vmem>>, %arg5: memref<1x128xf32, #tpu.memory_space<vmem>>, %arg6: memref<1xf32, #tpu.memory_space<smem>>, %arg7: memref<64x16xf32, #tpu.memory_space<vmem>>, %arg8: memref<64x384xf32, #tpu.memory_space<vmem>>, %arg9: memref<64x128xf32, #tpu.memory_space<vmem>>) attributes {dimension_semantics = [], scalar_prefetch = 0 : i64, scratch_operands = 2 : i64, tpu.core_type = #tpu.core_type<tc>} {
    %c0 = arith.constant 0 : index
    %c0_0 = arith.constant 0 : index
    %0 = vector.load %arg0[%c0, %c0_0] : memref<64x16xf32, #tpu.memory_space<vmem>>, vector<64x16xf32>
    %c0_1 = arith.constant 0 : index
    %c0_2 = arith.constant 0 : index
    %1 = vector.load %arg1[%c0_1, %c0_2] : memref<16x384xf32, #tpu.memory_space<vmem>>, vector<16x384xf32>
    %cst = arith.constant dense<0.000000e+00> : vector<64x384xf32>
    %2 = tpu.matmul %0, %1, %cst {dimension_numbers = #tpu.dot_dimension_numbers<[1], [0], [0], [1], [0, 0, 1, 1], [], []>} : vector<64x16xf32>, vector<16x384xf32>, vector<64x384xf32> -> vector<64x384xf32>
    %c0_3 = arith.constant 0 : index
    %c0_4 = arith.constant 0 : index
    %3 = vector.load %arg3[%c0_3, %c0_4] : memref<1x384xf32, #tpu.memory_space<vmem>>, vector<1x384xf32>
    %4 = vector.broadcast %3 : vector<1x384xf32> to vector<64x384xf32>
    %5 = arith.addf %2, %4 : vector<64x384xf32>
    %c0_5 = arith.constant 0 : index
    %c0_6 = arith.constant 0 : index
    %6 = vector.load %arg8[%c0_5, %c0_6] : memref<64x384xf32, #tpu.memory_space<vmem>>, vector<64x384xf32>
    tpu.vector_store %arg8[%c0_5, %c0_6], %5 {strides = array<i32>} : memref<64x384xf32, #tpu.memory_space<vmem>>, vector<64x384xf32>,
    %c0_7 = arith.constant 0 : index
    %c0_8 = arith.constant 0 : index
    %7 = vector.load %arg2[%c0_7, %c0_8] : memref<128x384xf32, #tpu.memory_space<vmem>>, vector<128x384xf32>
    %c0_9 = arith.constant 0 : index
    %c0_10 = arith.constant 0 : index
    %8 = vector.load %arg4[%c0_9, %c0_10] : memref<1x128xf32, #tpu.memory_space<vmem>>, vector<1x128xf32>
    %c0_11 = arith.constant 0 : index
    %c0_12 = arith.constant 0 : index
    %9 = vector.load %arg8[%c0_11, %c0_12] : memref<64x384xf32, #tpu.memory_space<vmem>>, vector<8x384xf32>
    %10 = vector.extract_strided_slice %9 {offsets = [0, 0], sizes = [8, 256], strides = [1, 1]} : vector<8x384xf32> to vector<8x256xf32>
    %11 = arith.negf %10 : vector<8x256xf32>
    %12 = math.exp %11 : vector<8x256xf32>
    %cst_13 = arith.constant 1.000000e+00 : f32
    %13 = vector.broadcast %cst_13 : f32 to vector<8x256xf32>
    %14 = arith.addf %13, %12 : vector<8x256xf32>
    %15 = arith.divf %13, %14 : vector<8x256xf32>
    %16 = vector.extract_strided_slice %15 {offsets = [0, 0], sizes = [8, 128], strides = [1, 1]} : vector<8x256xf32> to vector<8x128xf32>
    %17 = vector.extract_strided_slice %15 {offsets = [0, 128], sizes = [8, 128], strides = [1, 1]} : vector<8x256xf32> to vector<8x128xf32>
    %18 = vector.extract_strided_slice %9 {offsets = [0, 256], sizes = [8, 128], strides = [1, 1]} : vector<8x384xf32> to vector<8x128xf32>
    %19 = vector.broadcast %8 : vector<1x128xf32> to vector<8x128xf32>
    %20 = arith.mulf %16, %19 : vector<8x128xf32>
    %21 = arith.addf %18, %20 : vector<8x128xf32>
    %22 = math.tanh %21 : vector<8x128xf32>
    %23 = arith.mulf %17, %22 : vector<8x128xf32>
    %24 = arith.subf %22, %23 : vector<8x128xf32>
    %c0_14 = arith.constant 0 : index
    %c0_15 = arith.constant 0 : index
    %25 = vector.load %arg9[%c0_14, %c0_15] : memref<64x128xf32, #tpu.memory_space<vmem>>, vector<8x128xf32>
    tpu.vector_store %arg9[%c0_14, %c0_15], %24 {strides = array<i32>} : memref<64x128xf32, #tpu.memory_space<vmem>>, vector<8x128xf32>,
    %c1_i32 = arith.constant 1 : i32
    %c8_i32 = arith.constant 8 : i32
    %26 = arith.muli %c1_i32, %c8_i32 : i32
    %27 = tpu.assume_multiple %26, 8 : i32
    %28 = arith.index_cast %27 : i32 to index
    %c0_16 = arith.constant 0 : index
    %29 = vector.load %arg8[%28, %c0_16] : memref<64x384xf32, #tpu.memory_space<vmem>>, vector<8x384xf32>
    %cst_17 = arith.constant dense<0.000000e+00> : vector<8x384xf32>
    %30 = tpu.matmul %24, %7, %cst_17 {dimension_numbers = #tpu.dot_dimension_numbers<[1], [0], [0], [1], [0, 0, 1, 1], [], []>} : vector<8x128xf32>, vector<128x384xf32>, vector<8x384xf32> -> vector<8x384xf32>
    %31 = vector.extract_strided_slice %29 {offsets = [0, 0], sizes = [8, 256], strides = [1, 1]} : vector<8x384xf32> to vector<8x256xf32>
    %32 = vector.extract_strided_slice %30 {offsets = [0, 0], sizes = [8, 256], strides = [1, 1]} : vector<8x384xf32> to vector<8x256xf32>
    %33 = arith.addf %31, %32 : vector<8x256xf32>
    %34 = arith.negf %33 : vector<8x256xf32>
    %35 = math.exp %34 : vector<8x256xf32>
    %cst_18 = arith.constant 1.000000e+00 : f32
    %36 = vector.broadcast %cst_18 : f32 to vector<8x256xf32>
    %37 = arith.addf %36, %35 : vector<8x256xf32>
    %38 = arith.divf %36, %37 : vector<8x256xf32>
    %39 = vector.extract_strided_slice %38 {offsets = [0, 0], sizes = [8, 128], strides = [1, 1]} : vector<8x256xf32> to vector<8x128xf32>
    %40 = vector.extract_strided_slice %38 {offsets = [0, 128], sizes = [8, 128], strides = [1, 1]} : vector<8x256xf32> to vector<8x128xf32>
    %41 = vector.extract_strided_slice %29 {offsets = [0, 256], sizes = [8, 128], strides = [1, 1]} : vector<8x384xf32> to vector<8x128xf32>
    %42 = vector.extract_strided_slice %30 {offsets = [0, 256], sizes = [8, 128], strides = [1, 1]} : vector<8x384xf32> to vector<8x128xf32>
    %43 = vector.broadcast %8 : vector<1x128xf32> to vector<8x128xf32>
    %44 = arith.addf %42, %43 : vector<8x128xf32>
    %45 = arith.mulf %39, %44 : vector<8x128xf32>
    %46 = arith.addf %41, %45 : vector<8x128xf32>
    %47 = math.tanh %46 : vector<8x128xf32>
    %48 = arith.subf %24, %47 : vector<8x128xf32>
    %49 = arith.mulf %40, %48 : vector<8x128xf32>
    %50 = arith.addf %47, %49 : vector<8x128xf32>
    %51 = arith.index_cast %27 : i32 to index
    %c0_19 = arith.constant 0 : index
    %52 = vector.load %arg9[%51, %c0_19] : memref<64x128xf32, #tpu.memory_space<vmem>>, vector<8x128xf32>
    tpu.vector_store %arg9[%51, %c0_19], %50 {strides = array<i32>} : memref<64x128xf32, #tpu.memory_space<vmem>>, vector<8x128xf32>,
    %c2_i32 = arith.constant 2 : i32
    %c8_i32_20 = arith.constant 8 : i32
    %53 = arith.muli %c2_i32, %c8_i32_20 : i32
    %54 = tpu.assume_multiple %53, 8 : i32
    %55 = arith.index_cast %54 : i32 to index
    %c0_21 = arith.constant 0 : index
    %56 = vector.load %arg8[%55, %c0_21] : memref<64x384xf32, #tpu.memory_space<vmem>>, vector<8x384xf32>
    %cst_22 = arith.constant dense<0.000000e+00> : vector<8x384xf32>
    %57 = tpu.matmul %50, %7, %cst_22 {dimension_numbers = #tpu.dot_dimension_numbers<[1], [0], [0], [1], [0, 0, 1, 1], [], []>} : vector<8x128xf32>, vector<128x384xf32>, vector<8x384xf32> -> vector<8x384xf32>
    %58 = vector.extract_strided_slice %56 {offsets = [0, 0], sizes = [8, 256], strides = [1, 1]} : vector<8x384xf32> to vector<8x256xf32>
    %59 = vector.extract_strided_slice %57 {offsets = [0, 0], sizes = [8, 256], strides = [1, 1]} : vector<8x384xf32> to vector<8x256xf32>
    %60 = arith.addf %58, %59 : vector<8x256xf32>
    %61 = arith.negf %60 : vector<8x256xf32>
    %62 = math.exp %61 : vector<8x256xf32>
    %cst_23 = arith.constant 1.000000e+00 : f32
    %63 = vector.broadcast %cst_23 : f32 to vector<8x256xf32>
    %64 = arith.addf %63, %62 : vector<8x256xf32>
    %65 = arith.divf %63, %64 : vector<8x256xf32>
    %66 = vector.extract_strided_slice %65 {offsets = [0, 0], sizes = [8, 128], strides = [1, 1]} : vector<8x256xf32> to vector<8x128xf32>
    %67 = vector.extract_strided_slice %65 {offsets = [0, 128], sizes = [8, 128], strides = [1, 1]} : vector<8x256xf32> to vector<8x128xf32>
    %68 = vector.extract_strided_slice %56 {offsets = [0, 256], sizes = [8, 128], strides = [1, 1]} : vector<8x384xf32> to vector<8x128xf32>
    %69 = vector.extract_strided_slice %57 {offsets = [0, 256], sizes = [8, 128], strides = [1, 1]} : vector<8x384xf32> to vector<8x128xf32>
    %70 = vector.broadcast %8 : vector<1x128xf32> to vector<8x128xf32>
    %71 = arith.addf %69, %70 : vector<8x128xf32>
    %72 = arith.mulf %66, %71 : vector<8x128xf32>
    %73 = arith.addf %68, %72 : vector<8x128xf32>
    %74 = math.tanh %73 : vector<8x128xf32>
    %75 = arith.subf %50, %74 : vector<8x128xf32>
    %76 = arith.mulf %67, %75 : vector<8x128xf32>
    %77 = arith.addf %74, %76 : vector<8x128xf32>
    %78 = arith.index_cast %54 : i32 to index
    %c0_24 = arith.constant 0 : index
    %79 = vector.load %arg9[%78, %c0_24] : memref<64x128xf32, #tpu.memory_space<vmem>>, vector<8x128xf32>
    tpu.vector_store %arg9[%78, %c0_24], %77 {strides = array<i32>} : memref<64x128xf32, #tpu.memory_space<vmem>>, vector<8x128xf32>,
    %c3_i32 = arith.constant 3 : i32
    %c8_i32_25 = arith.constant 8 : i32
    %80 = arith.muli %c3_i32, %c8_i32_25 : i32
    %81 = tpu.assume_multiple %80, 8 : i32
    %82 = arith.index_cast %81 : i32 to index
    %c0_26 = arith.constant 0 : index
    %83 = vector.load %arg8[%82, %c0_26] : memref<64x384xf32, #tpu.memory_space<vmem>>, vector<8x384xf32>
    %cst_27 = arith.constant dense<0.000000e+00> : vector<8x384xf32>
    %84 = tpu.matmul %77, %7, %cst_27 {dimension_numbers = #tpu.dot_dimension_numbers<[1], [0], [0], [1], [0, 0, 1, 1], [], []>} : vector<8x128xf32>, vector<128x384xf32>, vector<8x384xf32> -> vector<8x384xf32>
    %85 = vector.extract_strided_slice %83 {offsets = [0, 0], sizes = [8, 256], strides = [1, 1]} : vector<8x384xf32> to vector<8x256xf32>
    %86 = vector.extract_strided_slice %84 {offsets = [0, 0], sizes = [8, 256], strides = [1, 1]} : vector<8x384xf32> to vector<8x256xf32>
    %87 = arith.addf %85, %86 : vector<8x256xf32>
    %88 = arith.negf %87 : vector<8x256xf32>
    %89 = math.exp %88 : vector<8x256xf32>
    %cst_28 = arith.constant 1.000000e+00 : f32
    %90 = vector.broadcast %cst_28 : f32 to vector<8x256xf32>
    %91 = arith.addf %90, %89 : vector<8x256xf32>
    %92 = arith.divf %90, %91 : vector<8x256xf32>
    %93 = vector.extract_strided_slice %92 {offsets = [0, 0], sizes = [8, 128], strides = [1, 1]} : vector<8x256xf32> to vector<8x128xf32>
    %94 = vector.extract_strided_slice %92 {offsets = [0, 128], sizes = [8, 128], strides = [1, 1]} : vector<8x256xf32> to vector<8x128xf32>
    %95 = vector.extract_strided_slice %83 {offsets = [0, 256], sizes = [8, 128], strides = [1, 1]} : vector<8x384xf32> to vector<8x128xf32>
    %96 = vector.extract_strided_slice %84 {offsets = [0, 256], sizes = [8, 128], strides = [1, 1]} : vector<8x384xf32> to vector<8x128xf32>
    %97 = vector.broadcast %8 : vector<1x128xf32> to vector<8x128xf32>
    %98 = arith.addf %96, %97 : vector<8x128xf32>
    %99 = arith.mulf %93, %98 : vector<8x128xf32>
    %100 = arith.addf %95, %99 : vector<8x128xf32>
    %101 = math.tanh %100 : vector<8x128xf32>
    %102 = arith.subf %77, %101 : vector<8x128xf32>
    %103 = arith.mulf %94, %102 : vector<8x128xf32>
    %104 = arith.addf %101, %103 : vector<8x128xf32>
    %105 = arith.index_cast %81 : i32 to index
    %c0_29 = arith.constant 0 : index
    %106 = vector.load %arg9[%105, %c0_29] : memref<64x128xf32, #tpu.memory_space<vmem>>, vector<8x128xf32>
    tpu.vector_store %arg9[%105, %c0_29], %104 {strides = array<i32>} : memref<64x128xf32, #tpu.memory_space<vmem>>, vector<8x128xf32>,
    %c4_i32 = arith.constant 4 : i32
    %c8_i32_30 = arith.constant 8 : i32
    %107 = arith.muli %c4_i32, %c8_i32_30 : i32
    %108 = tpu.assume_multiple %107, 8 : i32
    %109 = arith.index_cast %108 : i32 to index
    %c0_31 = arith.constant 0 : index
    %110 = vector.load %arg8[%109, %c0_31] : memref<64x384xf32, #tpu.memory_space<vmem>>, vector<8x384xf32>
    %cst_32 = arith.constant dense<0.000000e+00> : vector<8x384xf32>
    %111 = tpu.matmul %104, %7, %cst_32 {dimension_numbers = #tpu.dot_dimension_numbers<[1], [0], [0], [1], [0, 0, 1, 1], [], []>} : vector<8x128xf32>, vector<128x384xf32>, vector<8x384xf32> -> vector<8x384xf32>
    %112 = vector.extract_strided_slice %110 {offsets = [0, 0], sizes = [8, 256], strides = [1, 1]} : vector<8x384xf32> to vector<8x256xf32>
    %113 = vector.extract_strided_slice %111 {offsets = [0, 0], sizes = [8, 256], strides = [1, 1]} : vector<8x384xf32> to vector<8x256xf32>
    %114 = arith.addf %112, %113 : vector<8x256xf32>
    %115 = arith.negf %114 : vector<8x256xf32>
    %116 = math.exp %115 : vector<8x256xf32>
    %cst_33 = arith.constant 1.000000e+00 : f32
    %117 = vector.broadcast %cst_33 : f32 to vector<8x256xf32>
    %118 = arith.addf %117, %116 : vector<8x256xf32>
    %119 = arith.divf %117, %118 : vector<8x256xf32>
    %120 = vector.extract_strided_slice %119 {offsets = [0, 0], sizes = [8, 128], strides = [1, 1]} : vector<8x256xf32> to vector<8x128xf32>
    %121 = vector.extract_strided_slice %119 {offsets = [0, 128], sizes = [8, 128], strides = [1, 1]} : vector<8x256xf32> to vector<8x128xf32>
    %122 = vector.extract_strided_slice %110 {offsets = [0, 256], sizes = [8, 128], strides = [1, 1]} : vector<8x384xf32> to vector<8x128xf32>
    %123 = vector.extract_strided_slice %111 {offsets = [0, 256], sizes = [8, 128], strides = [1, 1]} : vector<8x384xf32> to vector<8x128xf32>
    %124 = vector.broadcast %8 : vector<1x128xf32> to vector<8x128xf32>
    %125 = arith.addf %123, %124 : vector<8x128xf32>
    %126 = arith.mulf %120, %125 : vector<8x128xf32>
    %127 = arith.addf %122, %126 : vector<8x128xf32>
    %128 = math.tanh %127 : vector<8x128xf32>
    %129 = arith.subf %104, %128 : vector<8x128xf32>
    %130 = arith.mulf %121, %129 : vector<8x128xf32>
    %131 = arith.addf %128, %130 : vector<8x128xf32>
    %132 = arith.index_cast %108 : i32 to index
    %c0_34 = arith.constant 0 : index
    %133 = vector.load %arg9[%132, %c0_34] : memref<64x128xf32, #tpu.memory_space<vmem>>, vector<8x128xf32>
    tpu.vector_store %arg9[%132, %c0_34], %131 {strides = array<i32>} : memref<64x128xf32, #tpu.memory_space<vmem>>, vector<8x128xf32>,
    %c5_i32 = arith.constant 5 : i32
    %c8_i32_35 = arith.constant 8 : i32
    %134 = arith.muli %c5_i32, %c8_i32_35 : i32
    %135 = tpu.assume_multiple %134, 8 : i32
    %136 = arith.index_cast %135 : i32 to index
    %c0_36 = arith.constant 0 : index
    %137 = vector.load %arg8[%136, %c0_36] : memref<64x384xf32, #tpu.memory_space<vmem>>, vector<8x384xf32>
    %cst_37 = arith.constant dense<0.000000e+00> : vector<8x384xf32>
    %138 = tpu.matmul %131, %7, %cst_37 {dimension_numbers = #tpu.dot_dimension_numbers<[1], [0], [0], [1], [0, 0, 1, 1], [], []>} : vector<8x128xf32>, vector<128x384xf32>, vector<8x384xf32> -> vector<8x384xf32>
    %139 = vector.extract_strided_slice %137 {offsets = [0, 0], sizes = [8, 256], strides = [1, 1]} : vector<8x384xf32> to vector<8x256xf32>
    %140 = vector.extract_strided_slice %138 {offsets = [0, 0], sizes = [8, 256], strides = [1, 1]} : vector<8x384xf32> to vector<8x256xf32>
    %141 = arith.addf %139, %140 : vector<8x256xf32>
    %142 = arith.negf %141 : vector<8x256xf32>
    %143 = math.exp %142 : vector<8x256xf32>
    %cst_38 = arith.constant 1.000000e+00 : f32
    %144 = vector.broadcast %cst_38 : f32 to vector<8x256xf32>
    %145 = arith.addf %144, %143 : vector<8x256xf32>
    %146 = arith.divf %144, %145 : vector<8x256xf32>
    %147 = vector.extract_strided_slice %146 {offsets = [0, 0], sizes = [8, 128], strides = [1, 1]} : vector<8x256xf32> to vector<8x128xf32>
    %148 = vector.extract_strided_slice %146 {offsets = [0, 128], sizes = [8, 128], strides = [1, 1]} : vector<8x256xf32> to vector<8x128xf32>
    %149 = vector.extract_strided_slice %137 {offsets = [0, 256], sizes = [8, 128], strides = [1, 1]} : vector<8x384xf32> to vector<8x128xf32>
    %150 = vector.extract_strided_slice %138 {offsets = [0, 256], sizes = [8, 128], strides = [1, 1]} : vector<8x384xf32> to vector<8x128xf32>
    %151 = vector.broadcast %8 : vector<1x128xf32> to vector<8x128xf32>
    %152 = arith.addf %150, %151 : vector<8x128xf32>
    %153 = arith.mulf %147, %152 : vector<8x128xf32>
    %154 = arith.addf %149, %153 : vector<8x128xf32>
    %155 = math.tanh %154 : vector<8x128xf32>
    %156 = arith.subf %131, %155 : vector<8x128xf32>
    %157 = arith.mulf %148, %156 : vector<8x128xf32>
    %158 = arith.addf %155, %157 : vector<8x128xf32>
    %159 = arith.index_cast %135 : i32 to index
    %c0_39 = arith.constant 0 : index
    %160 = vector.load %arg9[%159, %c0_39] : memref<64x128xf32, #tpu.memory_space<vmem>>, vector<8x128xf32>
    tpu.vector_store %arg9[%159, %c0_39], %158 {strides = array<i32>} : memref<64x128xf32, #tpu.memory_space<vmem>>, vector<8x128xf32>,
    %c6_i32 = arith.constant 6 : i32
    %c8_i32_40 = arith.constant 8 : i32
    %161 = arith.muli %c6_i32, %c8_i32_40 : i32
    %162 = tpu.assume_multiple %161, 8 : i32
    %163 = arith.index_cast %162 : i32 to index
    %c0_41 = arith.constant 0 : index
    %164 = vector.load %arg8[%163, %c0_41] : memref<64x384xf32, #tpu.memory_space<vmem>>, vector<8x384xf32>
    %cst_42 = arith.constant dense<0.000000e+00> : vector<8x384xf32>
    %165 = tpu.matmul %158, %7, %cst_42 {dimension_numbers = #tpu.dot_dimension_numbers<[1], [0], [0], [1], [0, 0, 1, 1], [], []>} : vector<8x128xf32>, vector<128x384xf32>, vector<8x384xf32> -> vector<8x384xf32>
    %166 = vector.extract_strided_slice %164 {offsets = [0, 0], sizes = [8, 256], strides = [1, 1]} : vector<8x384xf32> to vector<8x256xf32>
    %167 = vector.extract_strided_slice %165 {offsets = [0, 0], sizes = [8, 256], strides = [1, 1]} : vector<8x384xf32> to vector<8x256xf32>
    %168 = arith.addf %166, %167 : vector<8x256xf32>
    %169 = arith.negf %168 : vector<8x256xf32>
    %170 = math.exp %169 : vector<8x256xf32>
    %cst_43 = arith.constant 1.000000e+00 : f32
    %171 = vector.broadcast %cst_43 : f32 to vector<8x256xf32>
    %172 = arith.addf %171, %170 : vector<8x256xf32>
    %173 = arith.divf %171, %172 : vector<8x256xf32>
    %174 = vector.extract_strided_slice %173 {offsets = [0, 0], sizes = [8, 128], strides = [1, 1]} : vector<8x256xf32> to vector<8x128xf32>
    %175 = vector.extract_strided_slice %173 {offsets = [0, 128], sizes = [8, 128], strides = [1, 1]} : vector<8x256xf32> to vector<8x128xf32>
    %176 = vector.extract_strided_slice %164 {offsets = [0, 256], sizes = [8, 128], strides = [1, 1]} : vector<8x384xf32> to vector<8x128xf32>
    %177 = vector.extract_strided_slice %165 {offsets = [0, 256], sizes = [8, 128], strides = [1, 1]} : vector<8x384xf32> to vector<8x128xf32>
    %178 = vector.broadcast %8 : vector<1x128xf32> to vector<8x128xf32>
    %179 = arith.addf %177, %178 : vector<8x128xf32>
    %180 = arith.mulf %174, %179 : vector<8x128xf32>
    %181 = arith.addf %176, %180 : vector<8x128xf32>
    %182 = math.tanh %181 : vector<8x128xf32>
    %183 = arith.subf %158, %182 : vector<8x128xf32>
    %184 = arith.mulf %175, %183 : vector<8x128xf32>
    %185 = arith.addf %182, %184 : vector<8x128xf32>
    %186 = arith.index_cast %162 : i32 to index
    %c0_44 = arith.constant 0 : index
    %187 = vector.load %arg9[%186, %c0_44] : memref<64x128xf32, #tpu.memory_space<vmem>>, vector<8x128xf32>
    tpu.vector_store %arg9[%186, %c0_44], %185 {strides = array<i32>} : memref<64x128xf32, #tpu.memory_space<vmem>>, vector<8x128xf32>,
    %c7_i32 = arith.constant 7 : i32
    %c8_i32_45 = arith.constant 8 : i32
    %188 = arith.muli %c7_i32, %c8_i32_45 : i32
    %189 = tpu.assume_multiple %188, 8 : i32
    %190 = arith.index_cast %189 : i32 to index
    %c0_46 = arith.constant 0 : index
    %191 = vector.load %arg8[%190, %c0_46] : memref<64x384xf32, #tpu.memory_space<vmem>>, vector<8x384xf32>
    %cst_47 = arith.constant dense<0.000000e+00> : vector<8x384xf32>
    %192 = tpu.matmul %185, %7, %cst_47 {dimension_numbers = #tpu.dot_dimension_numbers<[1], [0], [0], [1], [0, 0, 1, 1], [], []>} : vector<8x128xf32>, vector<128x384xf32>, vector<8x384xf32> -> vector<8x384xf32>
    %193 = vector.extract_strided_slice %191 {offsets = [0, 0], sizes = [8, 256], strides = [1, 1]} : vector<8x384xf32> to vector<8x256xf32>
    %194 = vector.extract_strided_slice %192 {offsets = [0, 0], sizes = [8, 256], strides = [1, 1]} : vector<8x384xf32> to vector<8x256xf32>
    %195 = arith.addf %193, %194 : vector<8x256xf32>
    %196 = arith.negf %195 : vector<8x256xf32>
    %197 = math.exp %196 : vector<8x256xf32>
    %cst_48 = arith.constant 1.000000e+00 : f32
    %198 = vector.broadcast %cst_48 : f32 to vector<8x256xf32>
    %199 = arith.addf %198, %197 : vector<8x256xf32>
    %200 = arith.divf %198, %199 : vector<8x256xf32>
    %201 = vector.extract_strided_slice %200 {offsets = [0, 0], sizes = [8, 128], strides = [1, 1]} : vector<8x256xf32> to vector<8x128xf32>
    %202 = vector.extract_strided_slice %200 {offsets = [0, 128], sizes = [8, 128], strides = [1, 1]} : vector<8x256xf32> to vector<8x128xf32>
    %203 = vector.extract_strided_slice %191 {offsets = [0, 256], sizes = [8, 128], strides = [1, 1]} : vector<8x384xf32> to vector<8x128xf32>
    %204 = vector.extract_strided_slice %192 {offsets = [0, 256], sizes = [8, 128], strides = [1, 1]} : vector<8x384xf32> to vector<8x128xf32>
    %205 = vector.broadcast %8 : vector<1x128xf32> to vector<8x128xf32>
    %206 = arith.addf %204, %205 : vector<8x128xf32>
    %207 = arith.mulf %201, %206 : vector<8x128xf32>
    %208 = arith.addf %203, %207 : vector<8x128xf32>
    %209 = math.tanh %208 : vector<8x128xf32>
    %210 = arith.subf %185, %209 : vector<8x128xf32>
    %211 = arith.mulf %202, %210 : vector<8x128xf32>
    %212 = arith.addf %209, %211 : vector<8x128xf32>
    %213 = arith.index_cast %189 : i32 to index
    %c0_49 = arith.constant 0 : index
    %214 = vector.load %arg9[%213, %c0_49] : memref<64x128xf32, #tpu.memory_space<vmem>>, vector<8x128xf32>
    tpu.vector_store %arg9[%213, %c0_49], %212 {strides = array<i32>} : memref<64x128xf32, #tpu.memory_space<vmem>>, vector<8x128xf32>,
    %c7_i32_50 = arith.constant 7 : i32
    %c0_51 = arith.constant 0 : index
    %c0_52 = arith.constant 0 : index
    %215 = vector.load %arg9[%c0_51, %c0_52] : memref<64x128xf32, #tpu.memory_space<vmem>>, vector<64x128xf32>
    %c0_53 = arith.constant 0 : index
    %c0_54 = arith.constant 0 : index
    %216 = vector.load %arg5[%c0_53, %c0_54] : memref<1x128xf32, #tpu.memory_space<vmem>>, vector<1x128xf32>
    %217 = vector.broadcast %216 : vector<1x128xf32> to vector<64x128xf32>
    %218 = arith.mulf %215, %217 : vector<64x128xf32>
    %cst_55 = arith.constant dense<0.000000e+00> : vector<64xf32>
    %219 = vector.multi_reduction <add>, %218, %cst_55 [1] : vector<64x128xf32> to vector<64xf32>
    %220 = vector.shape_cast %219 : vector<64xf32> to vector<64x1xf32>
    %c0_56 = arith.constant 0 : index
    %221 = memref.load %arg6[%c0_56] : memref<1xf32, #tpu.memory_space<smem>>
    %222 = vector.broadcast %221 : f32 to vector<64x1xf32>
    %223 = arith.addf %220, %222 : vector<64x1xf32>
    %cst_57 = arith.constant 0.000000e+00 : f32
    %224 = vector.broadcast %cst_57 : f32 to vector<64x1xf32>
    %225 = arith.maximumf %223, %224 : vector<64x1xf32>
    %c0_58 = arith.constant 0 : index
    %c0_59 = arith.constant 0 : index
    %226 = vector.load %arg0[%c0_58, %c0_59] : memref<64x16xf32, #tpu.memory_space<vmem>>, vector<64x16xf32>
    %227 = vector.broadcast %225 : vector<64x1xf32> to vector<64x16xf32>
    %228 = arith.minimumf %227, %226 : vector<64x16xf32>
    %c0_60 = arith.constant 0 : index
    %c0_61 = arith.constant 0 : index
    %229 = vector.load %arg7[%c0_60, %c0_61] : memref<64x16xf32, #tpu.memory_space<vmem>>, vector<64x16xf32>
    tpu.vector_store %arg7[%c0_60, %c0_61], %228 {strides = array<i32>} : memref<64x16xf32, #tpu.memory_space<vmem>>, vector<64x16xf32>,
    return
  }
}

</mosaic_0001>

<llo_original>
// kernel: custom_rnn_forward.1
$region0: #{custom_rnn_forward.1}
  #allocation0 [shape = 'u32[]', space=smem, size = 0x4, offset = 0x4, fixed_abs, tag = 'smem constant byte address 0x4 - core index']
  #allocation1 [shape = 'u32[144,128]{1,0:T(1,128)}', space=vmem, size = 0x12000, scoped, tag = 'internal scratch']
  #allocation2 [shape = 'f32[64,384]{1,0:T(8,128)}', space=vmem, size = 0x18000, scoped, tag = 'scratch operand']
  #allocation3 [shape = 'f32[64,128]{1,0:T(8,128)}', space=vmem, size = 0x8000, scoped, tag = 'scratch operand']
  #allocation4 [shape = 'f32[1]{0:T(128)S(6)}', space=smem, size = 0x200, scoped, tag = 'scoped memory for custom_rnn_forward.1']
  %s0 = inlined_call_operand.vmem [shape: f32[64,16], index: 0, kind: input, shape index: {}]
  %s1 = inlined_call_operand.vmem [shape: f32[16,384], index: 1, kind: input, shape index: {}]
  %s2 = inlined_call_operand.vmem [shape: f32[128,384], index: 2, kind: input, shape index: {}]
  %s3 = inlined_call_operand.vmem [shape: f32[1,384], index: 3, kind: input, shape index: {}]
  %s4 = inlined_call_operand.vmem [shape: f32[1,128], index: 4, kind: input, shape index: {}]
  %s5 = inlined_call_operand.vmem [shape: f32[1,128], index: 5, kind: input, shape index: {}]
  %s6 = inlined_call_operand.<no memory space> [shape: f32[1], index: 6, kind: input, shape index: {}]
  %s7 = inlined_call_operand.vmem [shape: f32[64,16], index: 7, kind: output, shape index: {}]
  %s8 = sld [smem:[#allocation0]]
  $region38: #{custom_rnn_forward.1} parent=0
    _
  %s10 = ssub.s32 1, %s8
  %s11 = scalar_select 0, %s10, %s8
  %12 = sst [smem:[#allocation4]] %s6
  // Predicated region
  $region2: #{custom_rnn_forward.1} parent=0 // pred_check
    _
  $region3: #{custom_rnn_forward.1} parent=0 // pred_check_branch
    %14 = sbr.rel (0) target = $region5
  $region4: #{custom_rnn_forward.1} parent=0 // pred_region
    _
  $region5: #{custom_rnn_forward.1} parent=0 // pred_fallthru
    _
  // Predicated region
  $region6: #{custom_rnn_forward.1} parent=0 // pred_check
    _
  $region7: #{custom_rnn_forward.1} parent=0 // pred_check_branch
    %16 = sbr.rel (0) target = $region9
  $region8: #{custom_rnn_forward.1} parent=0 // pred_region
    _
  $region9: #{custom_rnn_forward.1} parent=0 // pred_fallthru
    _
  // Predicated region
  $region10: #{custom_rnn_forward.1} parent=0 // pred_check
    _
  $region11: #{custom_rnn_forward.1} parent=0 // pred_check_branch
    %18 = sbr.rel (0) target = $region13
  $region12: #{custom_rnn_forward.1} parent=0 // pred_region
    _
  $region13: #{custom_rnn_forward.1} parent=0 // pred_fallthru
    _
  // Predicated region
  $region14: #{custom_rnn_forward.1} parent=0 // pred_check
    _
  $region15: #{custom_rnn_forward.1} parent=0 // pred_check_branch
    %20 = sbr.rel (0) target = $region17
  $region16: #{custom_rnn_forward.1} parent=0 // pred_region
    _
  $region17: #{custom_rnn_forward.1} parent=0 // pred_fallthru
    _
  // Predicated region
  $region18: #{custom_rnn_forward.1} parent=0 // pred_check
    _
  $region19: #{custom_rnn_forward.1} parent=0 // pred_check_branch
    %22 = sbr.rel (0) target = $region21
  $region20: #{custom_rnn_forward.1} parent=0 // pred_region
    _
  $region21: #{custom_rnn_forward.1} parent=0 // pred_fallthru
    _
  // Predicated region
  $region22: #{custom_rnn_forward.1} parent=0 // pred_check
    _
  $region23: #{custom_rnn_forward.1} parent=0 // pred_check_branch
    %24 = sbr.rel (0) target = $region25
  $region24: #{custom_rnn_forward.1} parent=0 // pred_region
    _
  $region25: #{custom_rnn_forward.1} parent=0 // pred_fallthru
    _
  // Predicated region
  $region26: #{custom_rnn_forward.1} parent=0 // pred_check
    _
  $region27: #{custom_rnn_forward.1} parent=0 // pred_check_branch
    %26 = sbr.rel (0) target = $region29
  $region28: #{custom_rnn_forward.1} parent=0 // pred_region
    _
  $region29: #{custom_rnn_forward.1} parent=0 // pred_fallthru
    _
  %v27 = vld [vmem:[%s0] sm:$0xff]
  %v28 = vld [vmem:[%s0 + $0x8] sm:$0xff]
  %v29 = vld [vmem:[%s0 + $0x10] sm:$0xff]
  %v30 = vld [vmem:[%s0 + $0x18] sm:$0xff]
  %v31 = vld [vmem:[%s0 + $0x20] sm:$0xff]
  %v32 = vld [vmem:[%s0 + $0x28] sm:$0xff]
  %v33 = vld [vmem:[%s0 + $0x30] sm:$0xff]
  %v34 = vld [vmem:[%s0 + $0x38] sm:$0xff]
  %v35 = vld [vmem:[%s1] sm:$0xff]
  %v36 = vld [vmem:[%s1 + $0x8] sm:$0xff]
  %v37 = vld [vmem:[%s1 + $0x10] sm:$0xff]
  %v38 = vld [vmem:[%s1 + $0x18] sm:$0xff]
  %v39 = vld [vmem:[%s1 + $0x20] sm:$0xff]
  %v40 = vld [vmem:[%s1 + $0x28] sm:$0xff]
  %v41 = vld [vmem:[%s3] sm:$0x7]
  %v43 = vlaneseq
  %v44 = vshrl.u32 %v43, 7
  %v45 = vsub.s32 0, %v44
  %v46 = vrot.slane %v41, %v45
  %v47 = vlaneseq
  %v48 = vshrl.u32 %v47, 7
  %v49 = vsub.s32 1, %v48
  %v50 = vrot.slane %v41, %v49
  %v51 = vlaneseq
  %v52 = vshrl.u32 %v51, 7
  %v53 = vsub.s32 2, %v52
  %v54 = vrot.slane %v41, %v53
  %vm58 = vcmask 130048
  %v60 = vsel %vm58, %v27, 0
  %v63 = vsel %vm58, %v28, 0
  %v66 = vsel %vm58, %v29, 0
  %v69 = vsel %vm58, %v30, 0
  %v72 = vsel %vm58, %v31, 0
  %v75 = vsel %vm58, %v32, 0
  %v78 = vsel %vm58, %v33, 0
  %v81 = vsel %vm58, %v34, 0
  %83 = vmatprep.subr.mxu0 %v36
  %84 = vmatpush1.msra.mxu0 %v35
  %85 = vmatprep.subr.mxu0 %v39
  %86 = vmatpush1.msra.mxu0 %v38
  %87 = vmatprep.subr.mxu0 0.0
  %88 = vmatpush1.msra.mxu0 0.0
  %89 = vmatprep.subr.mxu0 0.0
  %90 = vmatpush1.msra.mxu0 0.0
  %91 = vmatprep.subr.mxu0 0.0
  %92 = vmatpush1.msra.mxu0 0.0
  %93 = vmatprep.subr.mxu0 0.0
  %94 = vmatpush1.msra.mxu0 0.0
  %95 = vmatprep.subr.mxu0 0.0
  %96 = vmatpush1.msra.mxu0 0.0
  %97 = vmatprep.subr.mxu0 0.0
  %98 = vmatpush1.msra.mxu0 0.0
  %99 = vmatprep.subr.mxu0 0.0
  %100 = vmatpush1.msra.mxu0 0.0
  %101 = vmatprep.subr.mxu0 0.0
  %102 = vmatpush1.msra.mxu0 0.0
  %103 = vmatprep.subr.mxu0 0.0
  %104 = vmatpush1.msra.mxu0 0.0
  %105 = vmatprep.subr.mxu0 0.0
  %106 = vmatpush1.msra.mxu0 0.0
  %107 = vmatprep.subr.mxu0 0.0
  %108 = vmatpush1.msra.mxu0 0.0
  %109 = vmatprep.subr.mxu0 0.0
  %110 = vmatpush1.msra.mxu0 0.0
  %111 = vmatprep.subr.mxu0 0.0
  %112 = vmatpush1.msra.mxu0 0.0
  %113 = vmatprep.subr.mxu0 0.0
  %114 = vmatpush1.msra.mxu0 0.0
  %115 = vmatprep.subr.mxu0 0.0
  %116 = vmatpush1.msra.mxu0 0.0
  %117 = vmatprep.subr.mxu0 0.0
  %118 = vmatpush1.msra.mxu0 0.0
  %119 = vmatprep.subr.mxu0 0.0
  %120 = vmatpush1.msra.mxu0 0.0
  %121 = vmatprep.subr.mxu0 0.0
  %122 = vmatpush1.msra.mxu0 0.0
  %123 = vmatprep.subr.mxu0 0.0
  %124 = vmatpush1.msra.mxu0 0.0
  %125 = vmatprep.subr.mxu0 0.0
  %126 = vmatpush1.msra.mxu0 0.0
  %127 = vmatprep.subr.mxu0 0.0
  %128 = vmatpush1.msra.mxu0 0.0
  %129 = vmatprep.subr.mxu0 0.0
  %130 = vmatpush1.msra.mxu0 0.0
  %131 = vmatprep.subr.mxu0 0.0
  %132 = vmatpush1.msra.mxu0 0.0
  %133 = vmatprep.subr.mxu0 0.0
  %134 = vmatpush1.msra.mxu0 0.0
  %135 = vmatprep.subr.mxu0 0.0
  %136 = vmatpush1.msra.mxu0 0.0
  %137 = vmatprep.subr.mxu0 0.0
  %138 = vmatpush1.msra.mxu0 0.0
  %139 = vmatprep.subr.mxu0 0.0
  %140 = vmatpush1.msra.mxu0 0.0
  %141 = vmatprep.subr.mxu0 0.0
  %142 = vmatpush1.msra.mxu0 0.0
  %143 = vmatprep.subr.mxu0 0.0
  %144 = vmatpush1.msra.mxu0 0.0
  %145 = vmatprep.subr.mxu0 0.0
  %146 = vmatpush1.msra.mxu0 0.0
  %147 = vmatprep.mubr.f32.mxu0 0.0
  %148 = vmatmul.mubr.f32.gmra.mrb[0].mxu0 %v60
  %v149 = vpop.f32.mrb[0].mxu0
  %v150 = vadd.f32 %v46, %v149
  %v151 = vpop.f32.mrb[0].mxu0
  %v152 = vadd.f32 %v50, %v151
  %153 = vmatprep.mubr.f32.mxu0 0.0
  %154 = vmatmul.mubr.f32.gmra.mrb[0].mxu0 %v63
  %v155 = vpop.f32.mrb[0].mxu0
  %v156 = vadd.f32 %v46, %v155
  %v157 = vpop.f32.mrb[0].mxu0
  %v158 = vadd.f32 %v50, %v157
  %159 = vmatprep.mubr.f32.mxu0 0.0
  %160 = vmatmul.mubr.f32.gmra.mrb[0].mxu0 %v66
  %v161 = vpop.f32.mrb[0].mxu0
  %v162 = vadd.f32 %v46, %v161
  %v163 = vpop.f32.mrb[0].mxu0
  %v164 = vadd.f32 %v50, %v163
  %165 = vmatprep.mubr.f32.mxu0 0.0
  %166 = vmatmul.mubr.f32.gmra.mrb[0].mxu0 %v69
  %v167 = vpop.f32.mrb[0].mxu0
  %v168 = vadd.f32 %v46, %v167
  %v169 = vpop.f32.mrb[0].mxu0
  %v170 = vadd.f32 %v50, %v169
  %171 = vmatprep.mubr.f32.mxu0 0.0
  %172 = vmatmul.mubr.f32.gmra.mrb[0].mxu0 %v72
  %v173 = vpop.f32.mrb[0].mxu0
  %v174 = vadd.f32 %v46, %v173
  %v175 = vpop.f32.mrb[0].mxu0
  %v176 = vadd.f32 %v50, %v175
  %177 = vmatprep.mubr.f32.mxu0 0.0
  %178 = vmatmul.mubr.f32.gmra.mrb[0].mxu0 %v75
  %v179 = vpop.f32.mrb[0].mxu0
  %v180 = vadd.f32 %v46, %v179
  %v181 = vpop.f32.mrb[0].mxu0
  %v182 = vadd.f32 %v50, %v181
  %183 = vmatprep.mubr.f32.mxu0 0.0
  %184 = vmatmul.mubr.f32.gmra.mrb[0].mxu0 %v78
  %v185 = vpop.f32.mrb[0].mxu0
  %v186 = vadd.f32 %v46, %v185
  %v187 = vpop.f32.mrb[0].mxu0
  %v188 = vadd.f32 %v50, %v187
  %189 = vmatprep.mubr.f32.mxu0 0.0
  %190 = vmatmul.mubr.f32.gmra.mrb[0].mxu0 %v81
  %v191 = vpop.f32.mrb[0].mxu0
  %v192 = vadd.f32 %v46, %v191
  %v193 = vpop.f32.mrb[0].mxu0
  %v194 = vadd.f32 %v50, %v193
  %195 = vdwg.mxu0
  %196 = vmatprep.subr.mxu0 0.0
  %197 = vmatpush1.msra.mxu0 %v37
  %198 = vmatprep.subr.mxu0 0.0
  %199 = vmatpush1.msra.mxu0 %v40
  %200 = vmatprep.subr.mxu0 0.0
  %201 = vmatpush1.msra.mxu0 0.0
  %202 = vmatprep.subr.mxu0 0.0
  %203 = vmatpush1.msra.mxu0 0.0
  %204 = vmatprep.subr.mxu0 0.0
  %205 = vmatpush1.msra.mxu0 0.0
  %206 = vmatprep.subr.mxu0 0.0
  %207 = vmatpush1.msra.mxu0 0.0
  %208 = vmatprep.subr.mxu0 0.0
  %209 = vmatpush1.msra.mxu0 0.0
  %210 = vmatprep.subr.mxu0 0.0
  %211 = vmatpush1.msra.mxu0 0.0
  %212 = vmatprep.subr.mxu0 0.0
  %213 = vmatpush1.msra.mxu0 0.0
  %214 = vmatprep.subr.mxu0 0.0
  %215 = vmatpush1.msra.mxu0 0.0
  %216 = vmatprep.subr.mxu0 0.0
  %217 = vmatpush1.msra.mxu0 0.0
  %218 = vmatprep.subr.mxu0 0.0
  %219 = vmatpush1.msra.mxu0 0.0
  %220 = vmatprep.subr.mxu0 0.0
  %221 = vmatpush1.msra.mxu0 0.0
  %222 = vmatprep.subr.mxu0 0.0
  %223 = vmatpush1.msra.mxu0 0.0
  %224 = vmatprep.subr.mxu0 0.0
  %225 = vmatpush1.msra.mxu0 0.0
  %226 = vmatprep.subr.mxu0 0.0
  %227 = vmatpush1.msra.mxu0 0.0
  %228 = vmatprep.subr.mxu0 0.0
  %229 = vmatpush1.msra.mxu0 0.0
  %230 = vmatprep.subr.mxu0 0.0
  %231 = vmatpush1.msra.mxu0 0.0
  %232 = vmatprep.subr.mxu0 0.0
  %233 = vmatpush1.msra.mxu0 0.0
  %234 = vmatprep.subr.mxu0 0.0
  %235 = vmatpush1.msra.mxu0 0.0
  %236 = vmatprep.subr.mxu0 0.0
  %237 = vmatpush1.msra.mxu0 0.0
  %238 = vmatprep.subr.mxu0 0.0
  %239 = vmatpush1.msra.mxu0 0.0
  %240 = vmatprep.subr.mxu0 0.0
  %241 = vmatpush1.msra.mxu0 0.0
  %242 = vmatprep.subr.mxu0 0.0
  %243 = vmatpush1.msra.mxu0 0.0
  %244 = vmatprep.subr.mxu0 0.0
  %245 = vmatpush1.msra.mxu0 0.0
  %246 = vmatprep.subr.mxu0 0.0
  %247 = vmatpush1.msra.mxu0 0.0
  %248 = vmatprep.subr.mxu0 0.0
  %249 = vmatpush1.msra.mxu0 0.0
  %250 = vmatprep.subr.mxu0 0.0
  %251 = vmatpush1.msra.mxu0 0.0
  %252 = vmatprep.subr.mxu0 0.0
  %253 = vmatpush1.msra.mxu0 0.0
  %254 = vmatprep.subr.mxu0 0.0
  %255 = vmatpush1.msra.mxu0 0.0
  %256 = vmatprep.subr.mxu0 0.0
  %257 = vmatpush1.msra.mxu0 0.0
  %258 = vmatprep.subr.mxu0 0.0
  %259 = vmatpush1.msra.mxu0 0.0
  %260 = vmatprep.mubr.f32.mxu0 0.0
  %261 = vmatmul.mubr.f32.gmra.mrb[0].mxu0 %v60
  %v262 = vpop.f32.mrb[0].mxu0
  %v263 = vadd.f32 %v54, %v262
  %v264 = vpop.f32.mrb[0].mxu0
  %265 = vmatprep.mubr.f32.mxu0 0.0
  %266 = vmatmul.mubr.f32.gmra.mrb[0].mxu0 %v63
  %v267 = vpop.f32.mrb[0].mxu0
  %v268 = vadd.f32 %v54, %v267
  %v269 = vpop.f32.mrb[0].mxu0
  %270 = vmatprep.mubr.f32.mxu0 0.0
  %271 = vmatmul.mubr.f32.gmra.mrb[0].mxu0 %v66
  %v272 = vpop.f32.mrb[0].mxu0
  %v273 = vadd.f32 %v54, %v272
  %v274 = vpop.f32.mrb[0].mxu0
  %275 = vmatprep.mubr.f32.mxu0 0.0
  %276 = vmatmul.mubr.f32.gmra.mrb[0].mxu0 %v69
  %v277 = vpop.f32.mrb[0].mxu0
  %v278 = vadd.f32 %v54, %v277
  %v279 = vpop.f32.mrb[0].mxu0
  %280 = vmatprep.mubr.f32.mxu0 0.0
  %281 = vmatmul.mubr.f32.gmra.mrb[0].mxu0 %v72
  %v282 = vpop.f32.mrb[0].mxu0
  %v283 = vadd.f32 %v54, %v282
  %v284 = vpop.f32.mrb[0].mxu0
  %285 = vmatprep.mubr.f32.mxu0 0.0
  %286 = vmatmul.mubr.f32.gmra.mrb[0].mxu0 %v75
  %v287 = vpop.f32.mrb[0].mxu0
  %v288 = vadd.f32 %v54, %v287
  %v289 = vpop.f32.mrb[0].mxu0
  %290 = vmatprep.mubr.f32.mxu0 0.0
  %291 = vmatmul.mubr.f32.gmra.mrb[0].mxu0 %v78
  %v292 = vpop.f32.mrb[0].mxu0
  %v293 = vadd.f32 %v54, %v292
  %v294 = vpop.f32.mrb[0].mxu0
  %295 = vmatprep.mubr.f32.mxu0 0.0
  %296 = vmatmul.mubr.f32.gmra.mrb[0].mxu0 %v81
  %v297 = vpop.f32.mrb[0].mxu0
  %v298 = vadd.f32 %v54, %v297
  %v299 = vpop.f32.mrb[0].mxu0
  %300 = vdwg.mxu0
  %301 = vst [vmem:[#allocation2] sm:$0xff] %v150
  %302 = vst [vmem:[#allocation2 + $0x8] sm:$0xff] %v152
  %303 = vst [vmem:[#allocation2 + $0x10] sm:$0xff] %v263
  %304 = vst [vmem:[#allocation2 + $0x18] sm:$0xff] %v156
  %305 = vst [vmem:[#allocation2 + $0x20] sm:$0xff] %v158
  %306 = vst [vmem:[#allocation2 + $0x28] sm:$0xff] %v268
  %307 = vst [vmem:[#allocation2 + $0x30] sm:$0xff] %v162
  %308 = vst [vmem:[#allocation2 + $0x38] sm:$0xff] %v164
  %309 = vst [vmem:[#allocation2 + $0x40] sm:$0xff] %v273
  %310 = vst [vmem:[#allocation2 + $0x48] sm:$0xff] %v168
  %311 = vst [vmem:[#allocation2 + $0x50] sm:$0xff] %v170
  %312 = vst [vmem:[#allocation2 + $0x58] sm:$0xff] %v278
  %313 = vst [vmem:[#allocation2 + $0x60] sm:$0xff] %v174
  %314 = vst [vmem:[#allocation2 + $0x68] sm:$0xff] %v176
  %315 = vst [vmem:[#allocation2 + $0x70] sm:$0xff] %v283
  %316 = vst [vmem:[#allocation2 + $0x78] sm:$0xff] %v180
  %317 = vst [vmem:[#allocation2 + $0x80] sm:$0xff] %v182
  %318 = vst [vmem:[#allocation2 + $0x88] sm:$0xff] %v288
  %319 = vst [vmem:[#allocation2 + $0x90] sm:$0xff] %v186
  %320 = vst [vmem:[#allocation2 + $0x98] sm:$0xff] %v188
  %321 = vst [vmem:[#allocation2 + $0xa0] sm:$0xff] %v293
  %322 = vst [vmem:[#allocation2 + $0xa8] sm:$0xff] %v192
  %323 = vst [vmem:[#allocation2 + $0xb0] sm:$0xff] %v194
  %324 = vst [vmem:[#allocation2 + $0xb8] sm:$0xff] %v298
  %v325 = vld [vmem:[%s2] sm:$0xff]
  %v326 = vld [vmem:[%s2 + $0x8] sm:$0xff]
  %v327 = vld [vmem:[%s2 + $0x10] sm:$0xff]
  %v328 = vld [vmem:[%s2 + $0x18] sm:$0xff]
  %v329 = vld [vmem:[%s2 + $0x20] sm:$0xff]
  %v330 = vld [vmem:[%s2 + $0x28] sm:$0xff]
  %v331 = vld [vmem:[%s2 + $0x30] sm:$0xff]
  %v332 = vld [vmem:[%s2 + $0x38] sm:$0xff]
  %v333 = vld [vmem:[%s2 + $0x40] sm:$0xff]
  %v334 = vld [vmem:[%s2 + $0x48] sm:$0xff]
  %v335 = vld [vmem:[%s2 + $0x50] sm:$0xff]
  %v336 = vld [vmem:[%s2 + $0x58] sm:$0xff]
  %v337 = vld [vmem:[%s2 + $0x60] sm:$0xff]
  %v338 = vld [vmem:[%s2 + $0x68] sm:$0xff]
  %v339 = vld [vmem:[%s2 + $0x70] sm:$0xff]
  %v340 = vld [vmem:[%s2 + $0x78] sm:$0xff]
  %v341 = vld [vmem:[%s2 + $0x80] sm:$0xff]
  %v342 = vld [vmem:[%s2 + $0x88] sm:$0xff]
  %v343 = vld [vmem:[%s2 + $0x90] sm:$0xff]
  %v344 = vld [vmem:[%s2 + $0x98] sm:$0xff]
  %v345 = vld [vmem:[%s2 + $0xa0] sm:$0xff]
  %v346 = vld [vmem:[%s2 + $0xa8] sm:$0xff]
  %v347 = vld [vmem:[%s2 + $0xb0] sm:$0xff]
  %v348 = vld [vmem:[%s2 + $0xb8] sm:$0xff]
  %v349 = vld [vmem:[%s2 + $0xc0] sm:$0xff]
  %v350 = vld [vmem:[%s2 + $0xc8] sm:$0xff]
  %v351 = vld [vmem:[%s2 + $0xd0] sm:$0xff]
  %v352 = vld [vmem:[%s2 + $0xd8] sm:$0xff]
  %v353 = vld [vmem:[%s2 + $0xe0] sm:$0xff]
  %v354 = vld [vmem:[%s2 + $0xe8] sm:$0xff]
  %v355 = vld [vmem:[%s2 + $0xf0] sm:$0xff]
  %v356 = vld [vmem:[%s2 + $0xf8] sm:$0xff]
  %v357 = vld [vmem:[%s2 + $0x100] sm:$0xff]
  %v358 = vld [vmem:[%s2 + $0x108] sm:$0xff]
  %v359 = vld [vmem:[%s2 + $0x110] sm:$0xff]
  %v360 = vld [vmem:[%s2 + $0x118] sm:$0xff]
  %v361 = vld [vmem:[%s2 + $0x120] sm:$0xff]
  %v362 = vld [vmem:[%s2 + $0x128] sm:$0xff]
  %v363 = vld [vmem:[%s2 + $0x130] sm:$0xff]
  %v364 = vld [vmem:[%s2 + $0x138] sm:$0xff]
  %v365 = vld [vmem:[%s2 + $0x140] sm:$0xff]
  %v366 = vld [vmem:[%s2 + $0x148] sm:$0xff]
  %v367 = vld [vmem:[%s2 + $0x150] sm:$0xff]
  %v368 = vld [vmem:[%s2 + $0x158] sm:$0xff]
  %v369 = vld [vmem:[%s2 + $0x160] sm:$0xff]
  %v370 = vld [vmem:[%s2 + $0x168] sm:$0xff]
  %v371 = vld [vmem:[%s2 + $0x170] sm:$0xff]
  %v372 = vld [vmem:[%s2 + $0x178] sm:$0xff]
  %v373 = vld [vmem:[%s4] sm:$0x1]
  %v374 = vld [vmem:[#allocation2] sm:$0xff]
  %v375 = vld [vmem:[#allocation2 + $0x8] sm:$0xff]
  %v376 = vld [vmem:[#allocation2 + $0x10] sm:$0xff]
  %v377 = vxor.u32 %v374, 2147483648
  %v378 = vxor.u32 %v375, 2147483648
  %v379 = vmul.f32 %v377, 1.442695
  %v380 = vpow.pop %v379
  %v381 = vmul.f32 %v378, 1.442695
  %v382 = vpow.pop %v381
  %v383 = vadd.f32 %v380, 1.0
  %v384 = vadd.f32 %v382, 1.0
  %v385 = vrcp.pop %v383
  %v386 = vmul.f32 1.0, %v385
  %v387 = vrcp.pop %v384
  %v388 = vmul.f32 1.0, %v387
  %v390 = vlaneseq
  %v391 = vshrl.u32 %v390, 7
  %v392 = vsub.s32 0, %v391
  %v393 = vrot.slane %v373, %v392
  %v395 = vmul.f32 %v386, %v393
  %v396 = vadd.f32 %v376, %v395
  %v397 = vtanh.pop %v396
  %v398 = vmul.f32 %v388, %v397
  %v399 = vsub.f32 %v397, %v398
  %400 = vst [vmem:[#allocation3] sm:$0xff] %v399
  %s401 = smul.u32 1, 3
  %s402 = smul.addr %s401, 8
  %s403 = scalar_lea.vmem [#allocation2], %s402
  %v404 = vld [vmem:[%s403] sm:$0xff]
  %v405 = vld [vmem:[%s403 + $0x8] sm:$0xff]
  %v406 = vld [vmem:[%s403 + $0x10] sm:$0xff]
  %407 = vmatprep.subr.mxu0 %v326
  %408 = vmatpush1.msra.mxu0 %v325
  %409 = vmatprep.subr.mxu0 %v329
  %410 = vmatpush1.msra.mxu0 %v328
  %411 = vmatprep.subr.mxu0 %v332
  %412 = vmatpush1.msra.mxu0 %v331
  %413 = vmatprep.subr.mxu0 %v335
  %414 = vmatpush1.msra.mxu0 %v334
  %415 = vmatprep.subr.mxu0 %v338
  %416 = vmatpush1.msra.mxu0 %v337
  %417 = vmatprep.subr.mxu0 %v341
  %418 = vmatpush1.msra.mxu0 %v340
  %419 = vmatprep.subr.mxu0 %v344
  %420 = vmatpush1.msra.mxu0 %v343
  %421 = vmatprep.subr.mxu0 %v347
  %422 = vmatpush1.msra.mxu0 %v346
  %423 = vmatprep.subr.mxu0 %v350
  %424 = vmatpush1.msra.mxu0 %v349
  %425 = vmatprep.subr.mxu0 %v353
  %426 = vmatpush1.msra.mxu0 %v352
  %427 = vmatprep.subr.mxu0 %v356
  %428 = vmatpush1.msra.mxu0 %v355
  %429 = vmatprep.subr.mxu0 %v359
  %430 = vmatpush1.msra.mxu0 %v358
  %431 = vmatprep.subr.mxu0 %v362
  %432 = vmatpush1.msra.mxu0 %v361
  %433 = vmatprep.subr.mxu0 %v365
  %434 = vmatpush1.msra.mxu0 %v364
  %435 = vmatprep.subr.mxu0 %v368
  %436 = vmatpush1.msra.mxu0 %v367
  %437 = vmatprep.subr.mxu0 %v371
  %438 = vmatpush1.msra.mxu0 %v370
  %439 = vmatprep.subr.mxu0 0.0
  %440 = vmatpush1.msra.mxu0 0.0
  %441 = vmatprep.subr.mxu0 0.0
  %442 = vmatpush1.msra.mxu0 0.0
  %443 = vmatprep.subr.mxu0 0.0
  %444 = vmatpush1.msra.mxu0 0.0
  %445 = vmatprep.subr.mxu0 0.0
  %446 = vmatpush1.msra.mxu0 0.0
  %447 = vmatprep.subr.mxu0 0.0
  %448 = vmatpush1.msra.mxu0 0.0
  %449 = vmatprep.subr.mxu0 0.0
  %450 = vmatpush1.msra.mxu0 0.0
  %451 = vmatprep.subr.mxu0 0.0
  %452 = vmatpush1.msra.mxu0 0.0
  %453 = vmatprep.subr.mxu0 0.0
  %454 = vmatpush1.msra.mxu0 0.0
  %455 = vmatprep.subr.mxu0 0.0
  %456 = vmatpush1.msra.mxu0 0.0
  %457 = vmatprep.subr.mxu0 0.0
  %458 = vmatpush1.msra.mxu0 0.0
  %459 = vmatprep.subr.mxu0 0.0
  %460 = vmatpush1.msra.mxu0 0.0
  %461 = vmatprep.subr.mxu0 0.0
  %462 = vmatpush1.msra.mxu0 0.0
  %463 = vmatprep.subr.mxu0 0.0
  %464 = vmatpush1.msra.mxu0 0.0
  %465 = vmatprep.subr.mxu0 0.0
  %466 = vmatpush1.msra.mxu0 0.0
  %467 = vmatprep.subr.mxu0 0.0
  %468 = vmatpush1.msra.mxu0 0.0
  %469 = vmatprep.subr.mxu0 0.0
  %470 = vmatpush1.msra.mxu0 0.0
  %471 = vmatprep.mubr.f32.mxu0 0.0
  %472 = vmatmul.mubr.f32.gmra.mrb[0].mxu0 %v399
  %v473 = vpop.f32.mrb[0].mxu0
  %v474 = vadd.f32 0.0, %v473
  %v475 = vpop.f32.mrb[0].mxu0
  %v476 = vadd.f32 0.0, %v475
  %477 = vdwg.mxu0
  %478 = vmatprep.subr.mxu0 0.0
  %479 = vmatpush1.msra.mxu0 %v327
  %480 = vmatprep.subr.mxu0 0.0
  %481 = vmatpush1.msra.mxu0 %v330
  %482 = vmatprep.subr.mxu0 0.0
  %483 = vmatpush1.msra.mxu0 %v333
  %484 = vmatprep.subr.mxu0 0.0
  %485 = vmatpush1.msra.mxu0 %v336
  %486 = vmatprep.subr.mxu0 0.0
  %487 = vmatpush1.msra.mxu0 %v339
  %488 = vmatprep.subr.mxu0 0.0
  %489 = vmatpush1.msra.mxu0 %v342
  %490 = vmatprep.subr.mxu0 0.0
  %491 = vmatpush1.msra.mxu0 %v345
  %492 = vmatprep.subr.mxu0 0.0
  %493 = vmatpush1.msra.mxu0 %v348
  %494 = vmatprep.subr.mxu0 0.0
  %495 = vmatpush1.msra.mxu0 %v351
  %496 = vmatprep.subr.mxu0 0.0
  %497 = vmatpush1.msra.mxu0 %v354
  %498 = vmatprep.subr.mxu0 0.0
  %499 = vmatpush1.msra.mxu0 %v357
  %500 = vmatprep.subr.mxu0 0.0
  %501 = vmatpush1.msra.mxu0 %v360
  %502 = vmatprep.subr.mxu0 0.0
  %503 = vmatpush1.msra.mxu0 %v363
  %504 = vmatprep.subr.mxu0 0.0
  %505 = vmatpush1.msra.mxu0 %v366
  %506 = vmatprep.subr.mxu0 0.0
  %507 = vmatpush1.msra.mxu0 %v369
  %508 = vmatprep.subr.mxu0 0.0
  %509 = vmatpush1.msra.mxu0 %v372
  %510 = vmatprep.subr.mxu0 0.0
  %511 = vmatpush1.msra.mxu0 0.0
  %512 = vmatprep.subr.mxu0 0.0
  %513 = vmatpush1.msra.mxu0 0.0
  %514 = vmatprep.subr.mxu0 0.0
  %515 = vmatpush1.msra.mxu0 0.0
  %516 = vmatprep.subr.mxu0 0.0
  %517 = vmatpush1.msra.mxu0 0.0
  %518 = vmatprep.subr.mxu0 0.0
  %519 = vmatpush1.msra.mxu0 0.0
  %520 = vmatprep.subr.mxu0 0.0
  %521 = vmatpush1.msra.mxu0 0.0
  %522 = vmatprep.subr.mxu0 0.0
  %523 = vmatpush1.msra.mxu0 0.0
  %524 = vmatprep.subr.mxu0 0.0
  %525 = vmatpush1.msra.mxu0 0.0
  %526 = vmatprep.subr.mxu0 0.0
  %527 = vmatpush1.msra.mxu0 0.0
  %528 = vmatprep.subr.mxu0 0.0
  %529 = vmatpush1.msra.mxu0 0.0
  %530 = vmatprep.subr.mxu0 0.0
  %531 = vmatpush1.msra.mxu0 0.0
  %532 = vmatprep.subr.mxu0 0.0
  %533 = vmatpush1.msra.mxu0 0.0
  %534 = vmatprep.subr.mxu0 0.0
  %535 = vmatpush1.msra.mxu0 0.0
  %536 = vmatprep.subr.mxu0 0.0
  %537 = vmatpush1.msra.mxu0 0.0
  %538 = vmatprep.subr.mxu0 0.0
  %539 = vmatpush1.msra.mxu0 0.0
  %540 = vmatprep.subr.mxu0 0.0
  %541 = vmatpush1.msra.mxu0 0.0
  %542 = vmatprep.mubr.f32.mxu0 0.0
  %543 = vmatmul.mubr.f32.gmra.mrb[0].mxu0 %v399
  %v544 = vpop.f32.mrb[0].mxu0
  %v545 = vadd.f32 0.0, %v544
  %v546 = vpop.f32.mrb[0].mxu0
  %547 = vdwg.mxu0
  %v548 = vadd.f32 %v404, %v474
  %v549 = vadd.f32 %v405, %v476
  %v550 = vxor.u32 %v548, 2147483648
  %v551 = vxor.u32 %v549, 2147483648
  %v552 = vmul.f32 %v550, 1.442695
  %v553 = vpow.pop %v552
  %v554 = vmul.f32 %v551, 1.442695
  %v555 = vpow.pop %v554
  %v556 = vadd.f32 %v553, 1.0
  %v557 = vadd.f32 %v555, 1.0
  %v558 = vrcp.pop %v556
  %v559 = vmul.f32 1.0, %v558
  %v560 = vrcp.pop %v557
  %v561 = vmul.f32 1.0, %v560
  %v562 = vadd.f32 %v545, %v393
  %v563 = vmul.f32 %v559, %v562
  %v564 = vadd.f32 %v406, %v563
  %v565 = vtanh.pop %v564
  %v566 = vsub.f32 %v399, %v565
  %v567 = vmul.f32 %v561, %v566
  %v568 = vadd.f32 %v565, %v567
  %s569 = scalar_lea.vmem [#allocation3], 8
  %570 = vst [vmem:[%s569] sm:$0xff] %v568
  %s571 = smul.u32 2, 3
  %s572 = smul.addr %s571, 8
  %s573 = scalar_lea.vmem [#allocation2], %s572
  %v574 = vld [vmem:[%s573] sm:$0xff]
  %v575 = vld [vmem:[%s573 + $0x8] sm:$0xff]
  %v576 = vld [vmem:[%s573 + $0x10] sm:$0xff]
  %577 = vmatprep.subr.mxu0 %v326
  %578 = vmatpush1.msra.mxu0 %v325
  %579 = vmatprep.subr.mxu0 %v329
  %580 = vmatpush1.msra.mxu0 %v328
  %581 = vmatprep.subr.mxu0 %v332
  %582 = vmatpush1.msra.mxu0 %v331
  %583 = vmatprep.subr.mxu0 %v335
  %584 = vmatpush1.msra.mxu0 %v334
  %585 = vmatprep.subr.mxu0 %v338
  %586 = vmatpush1.msra.mxu0 %v337
  %587 = vmatprep.subr.mxu0 %v341
  %588 = vmatpush1.msra.mxu0 %v340
  %589 = vmatprep.subr.mxu0 %v344
  %590 = vmatpush1.msra.mxu0 %v343
  %591 = vmatprep.subr.mxu0 %v347
  %592 = vmatpush1.msra.mxu0 %v346
  %593 = vmatprep.subr.mxu0 %v350
  %594 = vmatpush1.msra.mxu0 %v349
  %595 = vmatprep.subr.mxu0 %v353
  %596 = vmatpush1.msra.mxu0 %v352
  %597 = vmatprep.subr.mxu0 %v356
  %598 = vmatpush1.msra.mxu0 %v355
  %599 = vmatprep.subr.mxu0 %v359
  %600 = vmatpush1.msra.mxu0 %v358
  %601 = vmatprep.subr.mxu0 %v362
  %602 = vmatpush1.msra.mxu0 %v361
  %603 = vmatprep.subr.mxu0 %v365
  %604 = vmatpush1.msra.mxu0 %v364
  %605 = vmatprep.subr.mxu0 %v368
  %606 = vmatpush1.msra.mxu0 %v367
  %607 = vmatprep.subr.mxu0 %v371
  %608 = vmatpush1.msra.mxu0 %v370
  %609 = vmatprep.subr.mxu0 0.0
  %610 = vmatpush1.msra.mxu0 0.0
  %611 = vmatprep.subr.mxu0 0.0
  %612 = vmatpush1.msra.mxu0 0.0
  %613 = vmatprep.subr.mxu0 0.0
  %614 = vmatpush1.msra.mxu0 0.0
  %615 = vmatprep.subr.mxu0 0.0
  %616 = vmatpush1.msra.mxu0 0.0
  %617 = vmatprep.subr.mxu0 0.0
  %618 = vmatpush1.msra.mxu0 0.0
  %619 = vmatprep.subr.mxu0 0.0
  %620 = vmatpush1.msra.mxu0 0.0
  %621 = vmatprep.subr.mxu0 0.0
  %622 = vmatpush1.msra.mxu0 0.0
  %623 = vmatprep.subr.mxu0 0.0
  %624 = vmatpush1.msra.mxu0 0.0
  %625 = vmatprep.subr.mxu0 0.0
  %626 = vmatpush1.msra.mxu0 0.0
  %627 = vmatprep.subr.mxu0 0.0
  %628 = vmatpush1.msra.mxu0 0.0
  %629 = vmatprep.subr.mxu0 0.0
  %630 = vmatpush1.msra.mxu0 0.0
  %631 = vmatprep.subr.mxu0 0.0
  %632 = vmatpush1.msra.mxu0 0.0
  %633 = vmatprep.subr.mxu0 0.0
  %634 = vmatpush1.msra.mxu0 0.0
  %635 = vmatprep.subr.mxu0 0.0
  %636 = vmatpush1.msra.mxu0 0.0
  %637 = vmatprep.subr.mxu0 0.0
  %638 = vmatpush1.msra.mxu0 0.0
  %639 = vmatprep.subr.mxu0 0.0
  %640 = vmatpush1.msra.mxu0 0.0
  %641 = vmatprep.mubr.f32.mxu0 0.0
  %642 = vmatmul.mubr.f32.gmra.mrb[0].mxu0 %v568
  %v643 = vpop.f32.mrb[0].mxu0
  %v644 = vadd.f32 0.0, %v643
  %v645 = vpop.f32.mrb[0].mxu0
  %v646 = vadd.f32 0.0, %v645
  %647 = vdwg.mxu0
  %648 = vmatprep.subr.mxu0 0.0
  %649 = vmatpush1.msra.mxu0 %v327
  %650 = vmatprep.subr.mxu0 0.0
  %651 = vmatpush1.msra.mxu0 %v330
  %652 = vmatprep.subr.mxu0 0.0
  %653 = vmatpush1.msra.mxu0 %v333
  %654 = vmatprep.subr.mxu0 0.0
  %655 = vmatpush1.msra.mxu0 %v336
  %656 = vmatprep.subr.mxu0 0.0
  %657 = vmatpush1.msra.mxu0 %v339
  %658 = vmatprep.subr.mxu0 0.0
  %659 = vmatpush1.msra.mxu0 %v342
  %660 = vmatprep.subr.mxu0 0.0
  %661 = vmatpush1.msra.mxu0 %v345
  %662 = vmatprep.subr.mxu0 0.0
  %663 = vmatpush1.msra.mxu0 %v348
  %664 = vmatprep.subr.mxu0 0.0
  %665 = vmatpush1.msra.mxu0 %v351
  %666 = vmatprep.subr.mxu0 0.0
  %667 = vmatpush1.msra.mxu0 %v354
  %668 = vmatprep.subr.mxu0 0.0
  %669 = vmatpush1.msra.mxu0 %v357
  %670 = vmatprep.subr.mxu0 0.0
  %671 = vmatpush1.msra.mxu0 %v360
  %672 = vmatprep.subr.mxu0 0.0
  %673 = vmatpush1.msra.mxu0 %v363
  %674 = vmatprep.subr.mxu0 0.0
  %675 = vmatpush1.msra.mxu0 %v366
  %676 = vmatprep.subr.mxu0 0.0
  %677 = vmatpush1.msra.mxu0 %v369
  %678 = vmatprep.subr.mxu0 0.0
  %679 = vmatpush1.msra.mxu0 %v372
  %680 = vmatprep.subr.mxu0 0.0
  %681 = vmatpush1.msra.mxu0 0.0
  %682 = vmatprep.subr.mxu0 0.0
  %683 = vmatpush1.msra.mxu0 0.0
  %684 = vmatprep.subr.mxu0 0.0
  %685 = vmatpush1.msra.mxu0 0.0
  %686 = vmatprep.subr.mxu0 0.0
  %687 = vmatpush1.msra.mxu0 0.0
  %688 = vmatprep.subr.mxu0 0.0
  %689 = vmatpush1.msra.mxu0 0.0
  %690 = vmatprep.subr.mxu0 0.0
  %691 = vmatpush1.msra.mxu0 0.0
  %692 = vmatprep.subr.mxu0 0.0
  %693 = vmatpush1.msra.mxu0 0.0
  %694 = vmatprep.subr.mxu0 0.0
  %695 = vmatpush1.msra.mxu0 0.0
  %696 = vmatprep.subr.mxu0 0.0
  %697 = vmatpush1.msra.mxu0 0.0
  %698 = vmatprep.subr.mxu0 0.0
  %699 = vmatpush1.msra.mxu0 0.0
  %700 = vmatprep.subr.mxu0 0.0
  %701 = vmatpush1.msra.mxu0 0.0
  %702 = vmatprep.subr.mxu0 0.0
  %703 = vmatpush1.msra.mxu0 0.0
  %704 = vmatprep.subr.mxu0 0.0
  %705 = vmatpush1.msra.mxu0 0.0
  %706 = vmatprep.subr.mxu0 0.0
  %707 = vmatpush1.msra.mxu0 0.0
  %708 = vmatprep.subr.mxu0 0.0
  %709 = vmatpush1.msra.mxu0 0.0
  %710 = vmatprep.subr.mxu0 0.0
  %711 = vmatpush1.msra.mxu0 0.0
  %712 = vmatprep.mubr.f32.mxu0 0.0
  %713 = vmatmul.mubr.f32.gmra.mrb[0].mxu0 %v568
  %v714 = vpop.f32.mrb[0].mxu0
  %v715 = vadd.f32 0.0, %v714
  %v716 = vpop.f32.mrb[0].mxu0
  %717 = vdwg.mxu0
  %v718 = vadd.f32 %v574, %v644
  %v719 = vadd.f32 %v575, %v646
  %v720 = vxor.u32 %v718, 2147483648
  %v721 = vxor.u32 %v719, 2147483648
  %v722 = vmul.f32 %v720, 1.442695
  %v723 = vpow.pop %v722
  %v724 = vmul.f32 %v721, 1.442695
  %v725 = vpow.pop %v724
  %v726 = vadd.f32 %v723, 1.0
  %v727 = vadd.f32 %v725, 1.0
  %v728 = vrcp.pop %v726
  %v729 = vmul.f32 1.0, %v728
  %v730 = vrcp.pop %v727
  %v731 = vmul.f32 1.0, %v730
  %v732 = vadd.f32 %v715, %v393
  %v733 = vmul.f32 %v729, %v732
  %v734 = vadd.f32 %v576, %v733
  %v735 = vtanh.pop %v734
  %v736 = vsub.f32 %v568, %v735
  %v737 = vmul.f32 %v731, %v736
  %v738 = vadd.f32 %v735, %v737
  %s739 = scalar_lea.vmem [#allocation3], 16
  %740 = vst [vmem:[%s739] sm:$0xff] %v738
  %s741 = smul.u32 3, 3
  %s742 = smul.addr %s741, 8
  %s743 = scalar_lea.vmem [#allocation2], %s742
  %v744 = vld [vmem:[%s743] sm:$0xff]
  %v745 = vld [vmem:[%s743 + $0x8] sm:$0xff]
  %v746 = vld [vmem:[%s743 + $0x10] sm:$0xff]
  %747 = vmatprep.subr.mxu0 %v326
  %748 = vmatpush1.msra.mxu0 %v325
  %749 = vmatprep.subr.mxu0 %v329
  %750 = vmatpush1.msra.mxu0 %v328
  %751 = vmatprep.subr.mxu0 %v332
  %752 = vmatpush1.msra.mxu0 %v331
  %753 = vmatprep.subr.mxu0 %v335
  %754 = vmatpush1.msra.mxu0 %v334
  %755 = vmatprep.subr.mxu0 %v338
  %756 = vmatpush1.msra.mxu0 %v337
  %757 = vmatprep.subr.mxu0 %v341
  %758 = vmatpush1.msra.mxu0 %v340
  %759 = vmatprep.subr.mxu0 %v344
  %760 = vmatpush1.msra.mxu0 %v343
  %761 = vmatprep.subr.mxu0 %v347
  %762 = vmatpush1.msra.mxu0 %v346
  %763 = vmatprep.subr.mxu0 %v350
  %764 = vmatpush1.msra.mxu0 %v349
  %765 = vmatprep.subr.mxu0 %v353
  %766 = vmatpush1.msra.mxu0 %v352
  %767 = vmatprep.subr.mxu0 %v356
  %768 = vmatpush1.msra.mxu0 %v355
  %769 = vmatprep.subr.mxu0 %v359
  %770 = vmatpush1.msra.mxu0 %v358
  %771 = vmatprep.subr.mxu0 %v362
  %772 = vmatpush1.msra.mxu0 %v361
  %773 = vmatprep.subr.mxu0 %v365
  %774 = vmatpush1.msra.mxu0 %v364
  %775 = vmatprep.subr.mxu0 %v368
  %776 = vmatpush1.msra.mxu0 %v367
  %777 = vmatprep.subr.mxu0 %v371
  %778 = vmatpush1.msra.mxu0 %v370
  %779 = vmatprep.subr.mxu0 0.0
  %780 = vmatpush1.msra.mxu0 0.0
  %781 = vmatprep.subr.mxu0 0.0
  %782 = vmatpush1.msra.mxu0 0.0
  %783 = vmatprep.subr.mxu0 0.0
  %784 = vmatpush1.msra.mxu0 0.0
  %785 = vmatprep.subr.mxu0 0.0
  %786 = vmatpush1.msra.mxu0 0.0
  %787 = vmatprep.subr.mxu0 0.0
  %788 = vmatpush1.msra.mxu0 0.0
  %789 = vmatprep.subr.mxu0 0.0
  %790 = vmatpush1.msra.mxu0 0.0
  %791 = vmatprep.subr.mxu0 0.0
  %792 = vmatpush1.msra.mxu0 0.0
  %793 = vmatprep.subr.mxu0 0.0
  %794 = vmatpush1.msra.mxu0 0.0
  %795 = vmatprep.subr.mxu0 0.0
  %796 = vmatpush1.msra.mxu0 0.0
  %797 = vmatprep.subr.mxu0 0.0
  %798 = vmatpush1.msra.mxu0 0.0
  %799 = vmatprep.subr.mxu0 0.0
  %800 = vmatpush1.msra.mxu0 0.0
  %801 = vmatprep.subr.mxu0 0.0
  %802 = vmatpush1.msra.mxu0 0.0
  %803 = vmatprep.subr.mxu0 0.0
  %804 = vmatpush1.msra.mxu0 0.0
  %805 = vmatprep.subr.mxu0 0.0
  %806 = vmatpush1.msra.mxu0 0.0
  %807 = vmatprep.subr.mxu0 0.0
  %808 = vmatpush1.msra.mxu0 0.0
  %809 = vmatprep.subr.mxu0 0.0
  %810 = vmatpush1.msra.mxu0 0.0
  %811 = vmatprep.mubr.f32.mxu0 0.0
  %812 = vmatmul.mubr.f32.gmra.mrb[0].mxu0 %v738
  %v813 = vpop.f32.mrb[0].mxu0
  %v814 = vadd.f32 0.0, %v813
  %v815 = vpop.f32.mrb[0].mxu0
  %v816 = vadd.f32 0.0, %v815
  %817 = vdwg.mxu0
  %818 = vmatprep.subr.mxu0 0.0
  %819 = vmatpush1.msra.mxu0 %v327
  %820 = vmatprep.subr.mxu0 0.0
  %821 = vmatpush1.msra.mxu0 %v330
  %822 = vmatprep.subr.mxu0 0.0
  %823 = vmatpush1.msra.mxu0 %v333
  %824 = vmatprep.subr.mxu0 0.0
  %825 = vmatpush1.msra.mxu0 %v336
  %826 = vmatprep.subr.mxu0 0.0
  %827 = vmatpush1.msra.mxu0 %v339
  %828 = vmatprep.subr.mxu0 0.0
  %829 = vmatpush1.msra.mxu0 %v342
  %830 = vmatprep.subr.mxu0 0.0
  %831 = vmatpush1.msra.mxu0 %v345
  %832 = vmatprep.subr.mxu0 0.0
  %833 = vmatpush1.msra.mxu0 %v348
  %834 = vmatprep.subr.mxu0 0.0
  %835 = vmatpush1.msra.mxu0 %v351
  %836 = vmatprep.subr.mxu0 0.0
  %837 = vmatpush1.msra.mxu0 %v354
  %838 = vmatprep.subr.mxu0 0.0
  %839 = vmatpush1.msra.mxu0 %v357
  %840 = vmatprep.subr.mxu0 0.0
  %841 = vmatpush1.msra.mxu0 %v360
  %842 = vmatprep.subr.mxu0 0.0
  %843 = vmatpush1.msra.mxu0 %v363
  %844 = vmatprep.subr.mxu0 0.0
  %845 = vmatpush1.msra.mxu0 %v366
  %846 = vmatprep.subr.mxu0 0.0
  %847 = vmatpush1.msra.mxu0 %v369
  %848 = vmatprep.subr.mxu0 0.0
  %849 = vmatpush1.msra.mxu0 %v372
  %850 = vmatprep.subr.mxu0 0.0
  %851 = vmatpush1.msra.mxu0 0.0
  %852 = vmatprep.subr.mxu0 0.0
  %853 = vmatpush1.msra.mxu0 0.0
  %854 = vmatprep.subr.mxu0 0.0
  %855 = vmatpush1.msra.mxu0 0.0
  %856 = vmatprep.subr.mxu0 0.0
  %857 = vmatpush1.msra.mxu0 0.0
  %858 = vmatprep.subr.mxu0 0.0
  %859 = vmatpush1.msra.mxu0 0.0
  %860 = vmatprep.subr.mxu0 0.0
  %861 = vmatpush1.msra.mxu0 0.0
  %862 = vmatprep.subr.mxu0 0.0
  %863 = vmatpush1.msra.mxu0 0.0
  %864 = vmatprep.subr.mxu0 0.0
  %865 = vmatpush1.msra.mxu0 0.0
  %866 = vmatprep.subr.mxu0 0.0
  %867 = vmatpush1.msra.mxu0 0.0
  %868 = vmatprep.subr.mxu0 0.0
  %869 = vmatpush1.msra.mxu0 0.0
  %870 = vmatprep.subr.mxu0 0.0
  %871 = vmatpush1.msra.mxu0 0.0
  %872 = vmatprep.subr.mxu0 0.0
  %873 = vmatpush1.msra.mxu0 0.0
  %874 = vmatprep.subr.mxu0 0.0
  %875 = vmatpush1.msra.mxu0 0.0
  %876 = vmatprep.subr.mxu0 0.0
  %877 = vmatpush1.msra.mxu0 0.0
  %878 = vmatprep.subr.mxu0 0.0
  %879 = vmatpush1.msra.mxu0 0.0
  %880 = vmatprep.subr.mxu0 0.0
  %881 = vmatpush1.msra.mxu0 0.0
  %882 = vmatprep.mubr.f32.mxu0 0.0
  %883 = vmatmul.mubr.f32.gmra.mrb[0].mxu0 %v738
  %v884 = vpop.f32.mrb[0].mxu0
  %v885 = vadd.f32 0.0, %v884
  %v886 = vpop.f32.mrb[0].mxu0
  %887 = vdwg.mxu0
  %v888 = vadd.f32 %v744, %v814
  %v889 = vadd.f32 %v745, %v816
  %v890 = vxor.u32 %v888, 2147483648
  %v891 = vxor.u32 %v889, 2147483648
  %v892 = vmul.f32 %v890, 1.442695
  %v893 = vpow.pop %v892
  %v894 = vmul.f32 %v891, 1.442695
  %v895 = vpow.pop %v894
  %v896 = vadd.f32 %v893, 1.0
  %v897 = vadd.f32 %v895, 1.0
  %v898 = vrcp.pop %v896
  %v899 = vmul.f32 1.0, %v898
  %v900 = vrcp.pop %v897
  %v901 = vmul.f32 1.0, %v900
  %v902 = vadd.f32 %v885, %v393
  %v903 = vmul.f32 %v899, %v902
  %v904 = vadd.f32 %v746, %v903
  %v905 = vtanh.pop %v904
  %v906 = vsub.f32 %v738, %v905
  %v907 = vmul.f32 %v901, %v906
  %v908 = vadd.f32 %v905, %v907
  %s909 = scalar_lea.vmem [#allocation3], 24
  %910 = vst [vmem:[%s909] sm:$0xff] %v908
  %s911 = smul.u32 4, 3
  %s912 = smul.addr %s911, 8
  %s913 = scalar_lea.vmem [#allocation2], %s912
  %v914 = vld [vmem:[%s913] sm:$0xff]
  %v915 = vld [vmem:[%s913 + $0x8] sm:$0xff]
  %v916 = vld [vmem:[%s913 + $0x10] sm:$0xff]
  %917 = vmatprep.subr.mxu0 %v326
  %918 = vmatpush1.msra.mxu0 %v325
  %919 = vmatprep.subr.mxu0 %v329
  %920 = vmatpush1.msra.mxu0 %v328
  %921 = vmatprep.subr.mxu0 %v332
  %922 = vmatpush1.msra.mxu0 %v331
  %923 = vmatprep.subr.mxu0 %v335
  %924 = vmatpush1.msra.mxu0 %v334
  %925 = vmatprep.subr.mxu0 %v338
  %926 = vmatpush1.msra.mxu0 %v337
  %927 = vmatprep.subr.mxu0 %v341
  %928 = vmatpush1.msra.mxu0 %v340
  %929 = vmatprep.subr.mxu0 %v344
  %930 = vmatpush1.msra.mxu0 %v343
  %931 = vmatprep.subr.mxu0 %v347
  %932 = vmatpush1.msra.mxu0 %v346
  %933 = vmatprep.subr.mxu0 %v350
  %934 = vmatpush1.msra.mxu0 %v349
  %935 = vmatprep.subr.mxu0 %v353
  %936 = vmatpush1.msra.mxu0 %v352
  %937 = vmatprep.subr.mxu0 %v356
  %938 = vmatpush1.msra.mxu0 %v355
  %939 = vmatprep.subr.mxu0 %v359
  %940 = vmatpush1.msra.mxu0 %v358
  %941 = vmatprep.subr.mxu0 %v362
  %942 = vmatpush1.msra.mxu0 %v361
  %943 = vmatprep.subr.mxu0 %v365
  %944 = vmatpush1.msra.mxu0 %v364
  %945 = vmatprep.subr.mxu0 %v368
  %946 = vmatpush1.msra.mxu0 %v367
  %947 = vmatprep.subr.mxu0 %v371
  %948 = vmatpush1.msra.mxu0 %v370
  %949 = vmatprep.subr.mxu0 0.0
  %950 = vmatpush1.msra.mxu0 0.0
  %951 = vmatprep.subr.mxu0 0.0
  %952 = vmatpush1.msra.mxu0 0.0
  %953 = vmatprep.subr.mxu0 0.0
  %954 = vmatpush1.msra.mxu0 0.0
  %955 = vmatprep.subr.mxu0 0.0
  %956 = vmatpush1.msra.mxu0 0.0
  %957 = vmatprep.subr.mxu0 0.0
  %958 = vmatpush1.msra.mxu0 0.0
  %959 = vmatprep.subr.mxu0 0.0
  %960 = vmatpush1.msra.mxu0 0.0
  %961 = vmatprep.subr.mxu0 0.0
  %962 = vmatpush1.msra.mxu0 0.0
  %963 = vmatprep.subr.mxu0 0.0
  %964 = vmatpush1.msra.mxu0 0.0
  %965 = vmatprep.subr.mxu0 0.0
  %966 = vmatpush1.msra.mxu0 0.0
  %967 = vmatprep.subr.mxu0 0.0
  %968 = vmatpush1.msra.mxu0 0.0
  %969 = vmatprep.subr.mxu0 0.0
  %970 = vmatpush1.msra.mxu0 0.0
  %971 = vmatprep.subr.mxu0 0.0
  %972 = vmatpush1.msra.mxu0 0.0
  %973 = vmatprep.subr.mxu0 0.0
  %974 = vmatpush1.msra.mxu0 0.0
  %975 = vmatprep.subr.mxu0 0.0
  %976 = vmatpush1.msra.mxu0 0.0
  %977 = vmatprep.subr.mxu0 0.0
  %978 = vmatpush1.msra.mxu0 0.0
  %979 = vmatprep.subr.mxu0 0.0
  %980 = vmatpush1.msra.mxu0 0.0
  %981 = vmatprep.mubr.f32.mxu0 0.0
  %982 = vmatmul.mubr.f32.gmra.mrb[0].mxu0 %v908
  %v983 = vpop.f32.mrb[0].mxu0
  %v984 = vadd.f32 0.0, %v983
  %v985 = vpop.f32.mrb[0].mxu0
  %v986 = vadd.f32 0.0, %v985
  %987 = vdwg.mxu0
  %988 = vmatprep.subr.mxu0 0.0
  %989 = vmatpush1.msra.mxu0 %v327
  %990 = vmatprep.subr.mxu0 0.0
  %991 = vmatpush1.msra.mxu0 %v330
  %992 = vmatprep.subr.mxu0 0.0
  %993 = vmatpush1.msra.mxu0 %v333
  %994 = vmatprep.subr.mxu0 0.0
  %995 = vmatpush1.msra.mxu0 %v336
  %996 = vmatprep.subr.mxu0 0.0
  %997 = vmatpush1.msra.mxu0 %v339
  %998 = vmatprep.subr.mxu0 0.0
  %999 = vmatpush1.msra.mxu0 %v342
  %1000 = vmatprep.subr.mxu0 0.0
  %1001 = vmatpush1.msra.mxu0 %v345
  %1002 = vmatprep.subr.mxu0 0.0
  %1003 = vmatpush1.msra.mxu0 %v348
  %1004 = vmatprep.subr.mxu0 0.0
  %1005 = vmatpush1.msra.mxu0 %v351
  %1006 = vmatprep.subr.mxu0 0.0
  %1007 = vmatpush1.msra.mxu0 %v354
  %1008 = vmatprep.subr.mxu0 0.0
  %1009 = vmatpush1.msra.mxu0 %v357
  %1010 = vmatprep.subr.mxu0 0.0
  %1011 = vmatpush1.msra.mxu0 %v360
  %1012 = vmatprep.subr.mxu0 0.0
  %1013 = vmatpush1.msra.mxu0 %v363
  %1014 = vmatprep.subr.mxu0 0.0
  %1015 = vmatpush1.msra.mxu0 %v366
  %1016 = vmatprep.subr.mxu0 0.0
  %1017 = vmatpush1.msra.mxu0 %v369
  %1018 = vmatprep.subr.mxu0 0.0
  %1019 = vmatpush1.msra.mxu0 %v372
  %1020 = vmatprep.subr.mxu0 0.0
  %1021 = vmatpush1.msra.mxu0 0.0
  %1022 = vmatprep.subr.mxu0 0.0
  %1023 = vmatpush1.msra.mxu0 0.0
  %1024 = vmatprep.subr.mxu0 0.0
  %1025 = vmatpush1.msra.mxu0 0.0
  %1026 = vmatprep.subr.mxu0 0.0
  %1027 = vmatpush1.msra.mxu0 0.0
  %1028 = vmatprep.subr.mxu0 0.0
  %1029 = vmatpush1.msra.mxu0 0.0
  %1030 = vmatprep.subr.mxu0 0.0
  %1031 = vmatpush1.msra.mxu0 0.0
  %1032 = vmatprep.subr.mxu0 0.0
  %1033 = vmatpush1.msra.mxu0 0.0
  %1034 = vmatprep.subr.mxu0 0.0
  %1035 = vmatpush1.msra.mxu0 0.0
  %1036 = vmatprep.subr.mxu0 0.0
  %1037 = vmatpush1.msra.mxu0 0.0
  %1038 = vmatprep.subr.mxu0 0.0
  %1039 = vmatpush1.msra.mxu0 0.0
  %1040 = vmatprep.subr.mxu0 0.0
  %1041 = vmatpush1.msra.mxu0 0.0
  %1042 = vmatprep.subr.mxu0 0.0
  %1043 = vmatpush1.msra.mxu0 0.0
  %1044 = vmatprep.subr.mxu0 0.0
  %1045 = vmatpush1.msra.mxu0 0.0
  %1046 = vmatprep.subr.mxu0 0.0
  %1047 = vmatpush1.msra.mxu0 0.0
  %1048 = vmatprep.subr.mxu0 0.0
  %1049 = vmatpush1.msra.mxu0 0.0
  %1050 = vmatprep.subr.mxu0 0.0
  %1051 = vmatpush1.msra.mxu0 0.0
  %1052 = vmatprep.mubr.f32.mxu0 0.0
  %1053 = vmatmul.mubr.f32.gmra.mrb[0].mxu0 %v908
  %v1054 = vpop.f32.mrb[0].mxu0
  %v1055 = vadd.f32 0.0, %v1054
  %v1056 = vpop.f32.mrb[0].mxu0
  %1057 = vdwg.mxu0
  %v1058 = vadd.f32 %v914, %v984
  %v1059 = vadd.f32 %v915, %v986
  %v1060 = vxor.u32 %v1058, 2147483648
  %v1061 = vxor.u32 %v1059, 2147483648
  %v1062 = vmul.f32 %v1060, 1.442695
  %v1063 = vpow.pop %v1062
  %v1064 = vmul.f32 %v1061, 1.442695
  %v1065 = vpow.pop %v1064
  %v1066 = vadd.f32 %v1063, 1.0
  %v1067 = vadd.f32 %v1065, 1.0
  %v1068 = vrcp.pop %v1066
  %v1069 = vmul.f32 1.0, %v1068
  %v1070 = vrcp.pop %v1067
  %v1071 = vmul.f32 1.0, %v1070
  %v1072 = vadd.f32 %v1055, %v393
  %v1073 = vmul.f32 %v1069, %v1072
  %v1074 = vadd.f32 %v916, %v1073
  %v1075 = vtanh.pop %v1074
  %v1076 = vsub.f32 %v908, %v1075
  %v1077 = vmul.f32 %v1071, %v1076
  %v1078 = vadd.f32 %v1075, %v1077
  %s1079 = scalar_lea.vmem [#allocation3], 32
  %1080 = vst [vmem:[%s1079] sm:$0xff] %v1078
  %s1081 = smul.u32 5, 3
  %s1082 = smul.addr %s1081, 8
  %s1083 = scalar_lea.vmem [#allocation2], %s1082
  %v1084 = vld [vmem:[%s1083] sm:$0xff]
  %v1085 = vld [vmem:[%s1083 + $0x8] sm:$0xff]
  %v1086 = vld [vmem:[%s1083 + $0x10] sm:$0xff]
  %1087 = vmatprep.subr.mxu0 %v326
  %1088 = vmatpush1.msra.mxu0 %v325
  %1089 = vmatprep.subr.mxu0 %v329
  %1090 = vmatpush1.msra.mxu0 %v328
  %1091 = vmatprep.subr.mxu0 %v332
  %1092 = vmatpush1.msra.mxu0 %v331
  %1093 = vmatprep.subr.mxu0 %v335
  %1094 = vmatpush1.msra.mxu0 %v334
  %1095 = vmatprep.subr.mxu0 %v338
  %1096 = vmatpush1.msra.mxu0 %v337
  %1097 = vmatprep.subr.mxu0 %v341
  %1098 = vmatpush1.msra.mxu0 %v340
  %1099 = vmatprep.subr.mxu0 %v344
  %1100 = vmatpush1.msra.mxu0 %v343
  %1101 = vmatprep.subr.mxu0 %v347
  %1102 = vmatpush1.msra.mxu0 %v346
  %1103 = vmatprep.subr.mxu0 %v350
  %1104 = vmatpush1.msra.mxu0 %v349
  %1105 = vmatprep.subr.mxu0 %v353
  %1106 = vmatpush1.msra.mxu0 %v352
  %1107 = vmatprep.subr.mxu0 %v356
  %1108 = vmatpush1.msra.mxu0 %v355
  %1109 = vmatprep.subr.mxu0 %v359
  %1110 = vmatpush1.msra.mxu0 %v358
  %1111 = vmatprep.subr.mxu0 %v362
  %1112 = vmatpush1.msra.mxu0 %v361
  %1113 = vmatprep.subr.mxu0 %v365
  %1114 = vmatpush1.msra.mxu0 %v364
  %1115 = vmatprep.subr.mxu0 %v368
  %1116 = vmatpush1.msra.mxu0 %v367
  %1117 = vmatprep.subr.mxu0 %v371
  %1118 = vmatpush1.msra.mxu0 %v370
  %1119 = vmatprep.subr.mxu0 0.0
  %1120 = vmatpush1.msra.mxu0 0.0
  %1121 = vmatprep.subr.mxu0 0.0
  %1122 = vmatpush1.msra.mxu0 0.0
  %1123 = vmatprep.subr.mxu0 0.0
  %1124 = vmatpush1.msra.mxu0 0.0
  %1125 = vmatprep.subr.mxu0 0.0
  %1126 = vmatpush1.msra.mxu0 0.0
  %1127 = vmatprep.subr.mxu0 0.0
  %1128 = vmatpush1.msra.mxu0 0.0
  %1129 = vmatprep.subr.mxu0 0.0
  %1130 = vmatpush1.msra.mxu0 0.0
  %1131 = vmatprep.subr.mxu0 0.0
  %1132 = vmatpush1.msra.mxu0 0.0
  %1133 = vmatprep.subr.mxu0 0.0
  %1134 = vmatpush1.msra.mxu0 0.0
  %1135 = vmatprep.subr.mxu0 0.0
  %1136 = vmatpush1.msra.mxu0 0.0
  %1137 = vmatprep.subr.mxu0 0.0
  %1138 = vmatpush1.msra.mxu0 0.0
  %1139 = vmatprep.subr.mxu0 0.0
  %1140 = vmatpush1.msra.mxu0 0.0
  %1141 = vmatprep.subr.mxu0 0.0
  %1142 = vmatpush1.msra.mxu0 0.0
  %1143 = vmatprep.subr.mxu0 0.0
  %1144 = vmatpush1.msra.mxu0 0.0
  %1145 = vmatprep.subr.mxu0 0.0
  %1146 = vmatpush1.msra.mxu0 0.0
  %1147 = vmatprep.subr.mxu0 0.0
  %1148 = vmatpush1.msra.mxu0 0.0
  %1149 = vmatprep.subr.mxu0 0.0
  %1150 = vmatpush1.msra.mxu0 0.0
  %1151 = vmatprep.mubr.f32.mxu0 0.0
  %1152 = vmatmul.mubr.f32.gmra.mrb[0].mxu0 %v1078
  %v1153 = vpop.f32.mrb[0].mxu0
  %v1154 = vadd.f32 0.0, %v1153
  %v1155 = vpop.f32.mrb[0].mxu0
  %v1156 = vadd.f32 0.0, %v1155
  %1157 = vdwg.mxu0
  %1158 = vmatprep.subr.mxu0 0.0
  %1159 = vmatpush1.msra.mxu0 %v327
  %1160 = vmatprep.subr.mxu0 0.0
  %1161 = vmatpush1.msra.mxu0 %v330
  %1162 = vmatprep.subr.mxu0 0.0
  %1163 = vmatpush1.msra.mxu0 %v333
  %1164 = vmatprep.subr.mxu0 0.0
  %1165 = vmatpush1.msra.mxu0 %v336
  %1166 = vmatprep.subr.mxu0 0.0
  %1167 = vmatpush1.msra.mxu0 %v339
  %1168 = vmatprep.subr.mxu0 0.0
  %1169 = vmatpush1.msra.mxu0 %v342
  %1170 = vmatprep.subr.mxu0 0.0
  %1171 = vmatpush1.msra.mxu0 %v345
  %1172 = vmatprep.subr.mxu0 0.0
  %1173 = vmatpush1.msra.mxu0 %v348
  %1174 = vmatprep.subr.mxu0 0.0
  %1175 = vmatpush1.msra.mxu0 %v351
  %1176 = vmatprep.subr.mxu0 0.0
  %1177 = vmatpush1.msra.mxu0 %v354
  %1178 = vmatprep.subr.mxu0 0.0
  %1179 = vmatpush1.msra.mxu0 %v357
  %1180 = vmatprep.subr.mxu0 0.0
  %1181 = vmatpush1.msra.mxu0 %v360
  %1182 = vmatprep.subr.mxu0 0.0
  %1183 = vmatpush1.msra.mxu0 %v363
  %1184 = vmatprep.subr.mxu0 0.0
  %1185 = vmatpush1.msra.mxu0 %v366
  %1186 = vmatprep.subr.mxu0 0.0
  %1187 = vmatpush1.msra.mxu0 %v369
  %1188 = vmatprep.subr.mxu0 0.0
  %1189 = vmatpush1.msra.mxu0 %v372
  %1190 = vmatprep.subr.mxu0 0.0
  %1191 = vmatpush1.msra.mxu0 0.0
  %1192 = vmatprep.subr.mxu0 0.0
  %1193 = vmatpush1.msra.mxu0 0.0
  %1194 = vmatprep.subr.mxu0 0.0
  %1195 = vmatpush1.msra.mxu0 0.0
  %1196 = vmatprep.subr.mxu0 0.0
  %1197 = vmatpush1.msra.mxu0 0.0
  %1198 = vmatprep.subr.mxu0 0.0
  %1199 = vmatpush1.msra.mxu0 0.0
  %1200 = vmatprep.subr.mxu0 0.0
  %1201 = vmatpush1.msra.mxu0 0.0
  %1202 = vmatprep.subr.mxu0 0.0
  %1203 = vmatpush1.msra.mxu0 0.0
  %1204 = vmatprep.subr.mxu0 0.0
  %1205 = vmatpush1.msra.mxu0 0.0
  %1206 = vmatprep.subr.mxu0 0.0
  %1207 = vmatpush1.msra.mxu0 0.0
  %1208 = vmatprep.subr.mxu0 0.0
  %1209 = vmatpush1.msra.mxu0 0.0
  %1210 = vmatprep.subr.mxu0 0.0
  %1211 = vmatpush1.msra.mxu0 0.0
  %1212 = vmatprep.subr.mxu0 0.0
  %1213 = vmatpush1.msra.mxu0 0.0
  %1214 = vmatprep.subr.mxu0 0.0
  %1215 = vmatpush1.msra.mxu0 0.0
  %1216 = vmatprep.subr.mxu0 0.0
  %1217 = vmatpush1.msra.mxu0 0.0
  %1218 = vmatprep.subr.mxu0 0.0
  %1219 = vmatpush1.msra.mxu0 0.0
  %1220 = vmatprep.subr.mxu0 0.0
  %1221 = vmatpush1.msra.mxu0 0.0
  %1222 = vmatprep.mubr.f32.mxu0 0.0
  %1223 = vmatmul.mubr.f32.gmra.mrb[0].mxu0 %v1078
  %v1224 = vpop.f32.mrb[0].mxu0
  %v1225 = vadd.f32 0.0, %v1224
  %v1226 = vpop.f32.mrb[0].mxu0
  %1227 = vdwg.mxu0
  %v1228 = vadd.f32 %v1084, %v1154
  %v1229 = vadd.f32 %v1085, %v1156
  %v1230 = vxor.u32 %v1228, 2147483648
  %v1231 = vxor.u32 %v1229, 2147483648
  %v1232 = vmul.f32 %v1230, 1.442695
  %v1233 = vpow.pop %v1232
  %v1234 = vmul.f32 %v1231, 1.442695
  %v1235 = vpow.pop %v1234
  %v1236 = vadd.f32 %v1233, 1.0
  %v1237 = vadd.f32 %v1235, 1.0
  %v1238 = vrcp.pop %v1236
  %v1239 = vmul.f32 1.0, %v1238
  %v1240 = vrcp.pop %v1237
  %v1241 = vmul.f32 1.0, %v1240
  %v1242 = vadd.f32 %v1225, %v393
  %v1243 = vmul.f32 %v1239, %v1242
  %v1244 = vadd.f32 %v1086, %v1243
  %v1245 = vtanh.pop %v1244
  %v1246 = vsub.f32 %v1078, %v1245
  %v1247 = vmul.f32 %v1241, %v1246
  %v1248 = vadd.f32 %v1245, %v1247
  %s1249 = scalar_lea.vmem [#allocation3], 40
  %1250 = vst [vmem:[%s1249] sm:$0xff] %v1248
  %s1251 = smul.u32 6, 3
  %s1252 = smul.addr %s1251, 8
  %s1253 = scalar_lea.vmem [#allocation2], %s1252
  %v1254 = vld [vmem:[%s1253] sm:$0xff]
  %v1255 = vld [vmem:[%s1253 + $0x8] sm:$0xff]
  %v1256 = vld [vmem:[%s1253 + $0x10] sm:$0xff]
  %1257 = vmatprep.subr.mxu0 %v326
  %1258 = vmatpush1.msra.mxu0 %v325
  %1259 = vmatprep.subr.mxu0 %v329
  %1260 = vmatpush1.msra.mxu0 %v328
  %1261 = vmatprep.subr.mxu0 %v332
  %1262 = vmatpush1.msra.mxu0 %v331
  %1263 = vmatprep.subr.mxu0 %v335
  %1264 = vmatpush1.msra.mxu0 %v334
  %1265 = vmatprep.subr.mxu0 %v338
  %1266 = vmatpush1.msra.mxu0 %v337
  %1267 = vmatprep.subr.mxu0 %v341
  %1268 = vmatpush1.msra.mxu0 %v340
  %1269 = vmatprep.subr.mxu0 %v344
  %1270 = vmatpush1.msra.mxu0 %v343
  %1271 = vmatprep.subr.mxu0 %v347
  %1272 = vmatpush1.msra.mxu0 %v346
  %1273 = vmatprep.subr.mxu0 %v350
  %1274 = vmatpush1.msra.mxu0 %v349
  %1275 = vmatprep.subr.mxu0 %v353
  %1276 = vmatpush1.msra.mxu0 %v352
  %1277 = vmatprep.subr.mxu0 %v356
  %1278 = vmatpush1.msra.mxu0 %v355
  %1279 = vmatprep.subr.mxu0 %v359
  %1280 = vmatpush1.msra.mxu0 %v358
  %1281 = vmatprep.subr.mxu0 %v362
  %1282 = vmatpush1.msra.mxu0 %v361
  %1283 = vmatprep.subr.mxu0 %v365
  %1284 = vmatpush1.msra.mxu0 %v364
  %1285 = vmatprep.subr.mxu0 %v368
  %1286 = vmatpush1.msra.mxu0 %v367
  %1287 = vmatprep.subr.mxu0 %v371
  %1288 = vmatpush1.msra.mxu0 %v370
  %1289 = vmatprep.subr.mxu0 0.0
  %1290 = vmatpush1.msra.mxu0 0.0
  %1291 = vmatprep.subr.mxu0 0.0
  %1292 = vmatpush1.msra.mxu0 0.0
  %1293 = vmatprep.subr.mxu0 0.0
  %1294 = vmatpush1.msra.mxu0 0.0
  %1295 = vmatprep.subr.mxu0 0.0
  %1296 = vmatpush1.msra.mxu0 0.0
  %1297 = vmatprep.subr.mxu0 0.0
  %1298 = vmatpush1.msra.mxu0 0.0
  %1299 = vmatprep.subr.mxu0 0.0
  %1300 = vmatpush1.msra.mxu0 0.0
  %1301 = vmatprep.subr.mxu0 0.0
  %1302 = vmatpush1.msra.mxu0 0.0
  %1303 = vmatprep.subr.mxu0 0.0
  %1304 = vmatpush1.msra.mxu0 0.0
  %1305 = vmatprep.subr.mxu0 0.0
  %1306 = vmatpush1.msra.mxu0 0.0
  %1307 = vmatprep.subr.mxu0 0.0
  %1308 = vmatpush1.msra.mxu0 0.0
  %1309 = vmatprep.subr.mxu0 0.0
  %1310 = vmatpush1.msra.mxu0 0.0
  %1311 = vmatprep.subr.mxu0 0.0
  %1312 = vmatpush1.msra.mxu0 0.0
  %1313 = vmatprep.subr.mxu0 0.0
  %1314 = vmatpush1.msra.mxu0 0.0
  %1315 = vmatprep.subr.mxu0 0.0
  %1316 = vmatpush1.msra.mxu0 0.0
  %1317 = vmatprep.subr.mxu0 0.0
  %1318 = vmatpush1.msra.mxu0 0.0
  %1319 = vmatprep.subr.mxu0 0.0
  %1320 = vmatpush1.msra.mxu0 0.0
  %1321 = vmatprep.mubr.f32.mxu0 0.0
  %1322 = vmatmul.mubr.f32.gmra.mrb[0].mxu0 %v1248
  %v1323 = vpop.f32.mrb[0].mxu0
  %v1324 = vadd.f32 0.0, %v1323
  %v1325 = vpop.f32.mrb[0].mxu0
  %v1326 = vadd.f32 0.0, %v1325
  %1327 = vdwg.mxu0
  %1328 = vmatprep.subr.mxu0 0.0
  %1329 = vmatpush1.msra.mxu0 %v327
  %1330 = vmatprep.subr.mxu0 0.0
  %1331 = vmatpush1.msra.mxu0 %v330
  %1332 = vmatprep.subr.mxu0 0.0
  %1333 = vmatpush1.msra.mxu0 %v333
  %1334 = vmatprep.subr.mxu0 0.0
  %1335 = vmatpush1.msra.mxu0 %v336
  %1336 = vmatprep.subr.mxu0 0.0
  %1337 = vmatpush1.msra.mxu0 %v339
  %1338 = vmatprep.subr.mxu0 0.0
  %1339 = vmatpush1.msra.mxu0 %v342
  %1340 = vmatprep.subr.mxu0 0.0
  %1341 = vmatpush1.msra.mxu0 %v345
  %1342 = vmatprep.subr.mxu0 0.0
  %1343 = vmatpush1.msra.mxu0 %v348
  %1344 = vmatprep.subr.mxu0 0.0
  %1345 = vmatpush1.msra.mxu0 %v351
  %1346 = vmatprep.subr.mxu0 0.0
  %1347 = vmatpush1.msra.mxu0 %v354
  %1348 = vmatprep.subr.mxu0 0.0
  %1349 = vmatpush1.msra.mxu0 %v357
  %1350 = vmatprep.subr.mxu0 0.0
  %1351 = vmatpush1.msra.mxu0 %v360
  %1352 = vmatprep.subr.mxu0 0.0
  %1353 = vmatpush1.msra.mxu0 %v363
  %1354 = vmatprep.subr.mxu0 0.0
  %1355 = vmatpush1.msra.mxu0 %v366
  %1356 = vmatprep.subr.mxu0 0.0
  %1357 = vmatpush1.msra.mxu0 %v369
  %1358 = vmatprep.subr.mxu0 0.0
  %1359 = vmatpush1.msra.mxu0 %v372
  %1360 = vmatprep.subr.mxu0 0.0
  %1361 = vmatpush1.msra.mxu0 0.0
  %1362 = vmatprep.subr.mxu0 0.0
  %1363 = vmatpush1.msra.mxu0 0.0
  %1364 = vmatprep.subr.mxu0 0.0
  %1365 = vmatpush1.msra.mxu0 0.0
  %1366 = vmatprep.subr.mxu0 0.0
  %1367 = vmatpush1.msra.mxu0 0.0
  %1368 = vmatprep.subr.mxu0 0.0
  %1369 = vmatpush1.msra.mxu0 0.0
  %1370 = vmatprep.subr.mxu0 0.0
  %1371 = vmatpush1.msra.mxu0 0.0
  %1372 = vmatprep.subr.mxu0 0.0
  %1373 = vmatpush1.msra.mxu0 0.0
  %1374 = vmatprep.subr.mxu0 0.0
  %1375 = vmatpush1.msra.mxu0 0.0
  %1376 = vmatprep.subr.mxu0 0.0
  %1377 = vmatpush1.msra.mxu0 0.0
  %1378 = vmatprep.subr.mxu0 0.0
  %1379 = vmatpush1.msra.mxu0 0.0
  %1380 = vmatprep.subr.mxu0 0.0
  %1381 = vmatpush1.msra.mxu0 0.0
  %1382 = vmatprep.subr.mxu0 0.0
  %1383 = vmatpush1.msra.mxu0 0.0
  %1384 = vmatprep.subr.mxu0 0.0
  %1385 = vmatpush1.msra.mxu0 0.0
  %1386 = vmatprep.subr.mxu0 0.0
  %1387 = vmatpush1.msra.mxu0 0.0
  %1388 = vmatprep.subr.mxu0 0.0
  %1389 = vmatpush1.msra.mxu0 0.0
  %1390 = vmatprep.subr.mxu0 0.0
  %1391 = vmatpush1.msra.mxu0 0.0
  %1392 = vmatprep.mubr.f32.mxu0 0.0
  %1393 = vmatmul.mubr.f32.gmra.mrb[0].mxu0 %v1248
  %v1394 = vpop.f32.mrb[0].mxu0
  %v1395 = vadd.f32 0.0, %v1394
  %v1396 = vpop.f32.mrb[0].mxu0
  %1397 = vdwg.mxu0
  %v1398 = vadd.f32 %v1254, %v1324
  %v1399 = vadd.f32 %v1255, %v1326
  %v1400 = vxor.u32 %v1398, 2147483648
  %v1401 = vxor.u32 %v1399, 2147483648
  %v1402 = vmul.f32 %v1400, 1.442695
  %v1403 = vpow.pop %v1402
  %v1404 = vmul.f32 %v1401, 1.442695
  %v1405 = vpow.pop %v1404
  %v1406 = vadd.f32 %v1403, 1.0
  %v1407 = vadd.f32 %v1405, 1.0
  %v1408 = vrcp.pop %v1406
  %v1409 = vmul.f32 1.0, %v1408
  %v1410 = vrcp.pop %v1407
  %v1411 = vmul.f32 1.0, %v1410
  %v1412 = vadd.f32 %v1395, %v393
  %v1413 = vmul.f32 %v1409, %v1412
  %v1414 = vadd.f32 %v1256, %v1413
  %v1415 = vtanh.pop %v1414
  %v1416 = vsub.f32 %v1248, %v1415
  %v1417 = vmul.f32 %v1411, %v1416
  %v1418 = vadd.f32 %v1415, %v1417
  %s1419 = scalar_lea.vmem [#allocation3], 48
  %1420 = vst [vmem:[%s1419] sm:$0xff] %v1418
  %s1421 = smul.u32 7, 3
  %s1422 = smul.addr %s1421, 8
  %s1423 = scalar_lea.vmem [#allocation2], %s1422
  %v1424 = vld [vmem:[%s1423] sm:$0xff]
  %v1425 = vld [vmem:[%s1423 + $0x8] sm:$0xff]
  %v1426 = vld [vmem:[%s1423 + $0x10] sm:$0xff]
  %1427 = vmatprep.subr.mxu0 %v326
  %1428 = vmatpush1.msra.mxu0 %v325
  %1429 = vmatprep.subr.mxu0 %v329
  %1430 = vmatpush1.msra.mxu0 %v328
  %1431 = vmatprep.subr.mxu0 %v332
  %1432 = vmatpush1.msra.mxu0 %v331
  %1433 = vmatprep.subr.mxu0 %v335
  %1434 = vmatpush1.msra.mxu0 %v334
  %1435 = vmatprep.subr.mxu0 %v338
  %1436 = vmatpush1.msra.mxu0 %v337
  %1437 = vmatprep.subr.mxu0 %v341
  %1438 = vmatpush1.msra.mxu0 %v340
  %1439 = vmatprep.subr.mxu0 %v344
  %1440 = vmatpush1.msra.mxu0 %v343
  %1441 = vmatprep.subr.mxu0 %v347
  %1442 = vmatpush1.msra.mxu0 %v346
  %1443 = vmatprep.subr.mxu0 %v350
  %1444 = vmatpush1.msra.mxu0 %v349
  %1445 = vmatprep.subr.mxu0 %v353
  %1446 = vmatpush1.msra.mxu0 %v352
  %1447 = vmatprep.subr.mxu0 %v356
  %1448 = vmatpush1.msra.mxu0 %v355
  %1449 = vmatprep.subr.mxu0 %v359
  %1450 = vmatpush1.msra.mxu0 %v358
  %1451 = vmatprep.subr.mxu0 %v362
  %1452 = vmatpush1.msra.mxu0 %v361
  %1453 = vmatprep.subr.mxu0 %v365
  %1454 = vmatpush1.msra.mxu0 %v364
  %1455 = vmatprep.subr.mxu0 %v368
  %1456 = vmatpush1.msra.mxu0 %v367
  %1457 = vmatprep.subr.mxu0 %v371
  %1458 = vmatpush1.msra.mxu0 %v370
  %1459 = vmatprep.subr.mxu0 0.0
  %1460 = vmatpush1.msra.mxu0 0.0
  %1461 = vmatprep.subr.mxu0 0.0
  %1462 = vmatpush1.msra.mxu0 0.0
  %1463 = vmatprep.subr.mxu0 0.0
  %1464 = vmatpush1.msra.mxu0 0.0
  %1465 = vmatprep.subr.mxu0 0.0
  %1466 = vmatpush1.msra.mxu0 0.0
  %1467 = vmatprep.subr.mxu0 0.0
  %1468 = vmatpush1.msra.mxu0 0.0
  %1469 = vmatprep.subr.mxu0 0.0
  %1470 = vmatpush1.msra.mxu0 0.0
  %1471 = vmatprep.subr.mxu0 0.0
  %1472 = vmatpush1.msra.mxu0 0.0
  %1473 = vmatprep.subr.mxu0 0.0
  %1474 = vmatpush1.msra.mxu0 0.0
  %1475 = vmatprep.subr.mxu0 0.0
  %1476 = vmatpush1.msra.mxu0 0.0
  %1477 = vmatprep.subr.mxu0 0.0
  %1478 = vmatpush1.msra.mxu0 0.0
  %1479 = vmatprep.subr.mxu0 0.0
  %1480 = vmatpush1.msra.mxu0 0.0
  %1481 = vmatprep.subr.mxu0 0.0
  %1482 = vmatpush1.msra.mxu0 0.0
  %1483 = vmatprep.subr.mxu0 0.0
  %1484 = vmatpush1.msra.mxu0 0.0
  %1485 = vmatprep.subr.mxu0 0.0
  %1486 = vmatpush1.msra.mxu0 0.0
  %1487 = vmatprep.subr.mxu0 0.0
  %1488 = vmatpush1.msra.mxu0 0.0
  %1489 = vmatprep.subr.mxu0 0.0
  %1490 = vmatpush1.msra.mxu0 0.0
  %1491 = vmatprep.mubr.f32.mxu0 0.0
  %1492 = vmatmul.mubr.f32.gmra.mrb[0].mxu0 %v1418
  %v1493 = vpop.f32.mrb[0].mxu0
  %v1494 = vadd.f32 0.0, %v1493
  %v1495 = vpop.f32.mrb[0].mxu0
  %v1496 = vadd.f32 0.0, %v1495
  %1497 = vdwg.mxu0
  %1498 = vmatprep.subr.mxu0 0.0
  %1499 = vmatpush1.msra.mxu0 %v327
  %1500 = vmatprep.subr.mxu0 0.0
  %1501 = vmatpush1.msra.mxu0 %v330
  %1502 = vmatprep.subr.mxu0 0.0
  %1503 = vmatpush1.msra.mxu0 %v333
  %1504 = vmatprep.subr.mxu0 0.0
  %1505 = vmatpush1.msra.mxu0 %v336
  %1506 = vmatprep.subr.mxu0 0.0
  %1507 = vmatpush1.msra.mxu0 %v339
  %1508 = vmatprep.subr.mxu0 0.0
  %1509 = vmatpush1.msra.mxu0 %v342
  %1510 = vmatprep.subr.mxu0 0.0
  %1511 = vmatpush1.msra.mxu0 %v345
  %1512 = vmatprep.subr.mxu0 0.0
  %1513 = vmatpush1.msra.mxu0 %v348
  %1514 = vmatprep.subr.mxu0 0.0
  %1515 = vmatpush1.msra.mxu0 %v351
  %1516 = vmatprep.subr.mxu0 0.0
  %1517 = vmatpush1.msra.mxu0 %v354
  %1518 = vmatprep.subr.mxu0 0.0
  %1519 = vmatpush1.msra.mxu0 %v357
  %1520 = vmatprep.subr.mxu0 0.0
  %1521 = vmatpush1.msra.mxu0 %v360
  %1522 = vmatprep.subr.mxu0 0.0
  %1523 = vmatpush1.msra.mxu0 %v363
  %1524 = vmatprep.subr.mxu0 0.0
  %1525 = vmatpush1.msra.mxu0 %v366
  %1526 = vmatprep.subr.mxu0 0.0
  %1527 = vmatpush1.msra.mxu0 %v369
  %1528 = vmatprep.subr.mxu0 0.0
  %1529 = vmatpush1.msra.mxu0 %v372
  %1530 = vmatprep.subr.mxu0 0.0
  %1531 = vmatpush1.msra.mxu0 0.0
  %1532 = vmatprep.subr.mxu0 0.0
  %1533 = vmatpush1.msra.mxu0 0.0
  %1534 = vmatprep.subr.mxu0 0.0
  %1535 = vmatpush1.msra.mxu0 0.0
  %1536 = vmatprep.subr.mxu0 0.0
  %1537 = vmatpush1.msra.mxu0 0.0
  %1538 = vmatprep.subr.mxu0 0.0
  %1539 = vmatpush1.msra.mxu0 0.0
  %1540 = vmatprep.subr.mxu0 0.0
  %1541 = vmatpush1.msra.mxu0 0.0
  %1542 = vmatprep.subr.mxu0 0.0
  %1543 = vmatpush1.msra.mxu0 0.0
  %1544 = vmatprep.subr.mxu0 0.0
  %1545 = vmatpush1.msra.mxu0 0.0
  %1546 = vmatprep.subr.mxu0 0.0
  %1547 = vmatpush1.msra.mxu0 0.0
  %1548 = vmatprep.subr.mxu0 0.0
  %1549 = vmatpush1.msra.mxu0 0.0
  %1550 = vmatprep.subr.mxu0 0.0
  %1551 = vmatpush1.msra.mxu0 0.0
  %1552 = vmatprep.subr.mxu0 0.0
  %1553 = vmatpush1.msra.mxu0 0.0
  %1554 = vmatprep.subr.mxu0 0.0
  %1555 = vmatpush1.msra.mxu0 0.0
  %1556 = vmatprep.subr.mxu0 0.0
  %1557 = vmatpush1.msra.mxu0 0.0
  %1558 = vmatprep.subr.mxu0 0.0
  %1559 = vmatpush1.msra.mxu0 0.0
  %1560 = vmatprep.subr.mxu0 0.0
  %1561 = vmatpush1.msra.mxu0 0.0
  %1562 = vmatprep.mubr.f32.mxu0 0.0
  %1563 = vmatmul.mubr.f32.gmra.mrb[0].mxu0 %v1418
  %v1564 = vpop.f32.mrb[0].mxu0
  %v1565 = vadd.f32 0.0, %v1564
  %v1566 = vpop.f32.mrb[0].mxu0
  %1567 = vdwg.mxu0
  %v1568 = vadd.f32 %v1424, %v1494
  %v1569 = vadd.f32 %v1425, %v1496
  %v1570 = vxor.u32 %v1568, 2147483648
  %v1571 = vxor.u32 %v1569, 2147483648
  %v1572 = vmul.f32 %v1570, 1.442695
  %v1573 = vpow.pop %v1572
  %v1574 = vmul.f32 %v1571, 1.442695
  %v1575 = vpow.pop %v1574
  %v1576 = vadd.f32 %v1573, 1.0
  %v1577 = vadd.f32 %v1575, 1.0
  %v1578 = vrcp.pop %v1576
  %v1579 = vmul.f32 1.0, %v1578
  %v1580 = vrcp.pop %v1577
  %v1581 = vmul.f32 1.0, %v1580
  %v1582 = vadd.f32 %v1565, %v393
  %v1583 = vmul.f32 %v1579, %v1582
  %v1584 = vadd.f32 %v1426, %v1583
  %v1585 = vtanh.pop %v1584
  %v1586 = vsub.f32 %v1418, %v1585
  %v1587 = vmul.f32 %v1581, %v1586
  %v1588 = vadd.f32 %v1585, %v1587
  %s1589 = scalar_lea.vmem [#allocation3], 56
  %1590 = vst [vmem:[%s1589] sm:$0xff] %v1588
  %v1591 = vld [vmem:[#allocation3] sm:$0xff]
  %v1592 = vld [vmem:[#allocation3 + $0x8] sm:$0xff]
  %v1593 = vld [vmem:[#allocation3 + $0x10] sm:$0xff]
  %v1594 = vld [vmem:[#allocation3 + $0x18] sm:$0xff]
  %v1595 = vld [vmem:[#allocation3 + $0x20] sm:$0xff]
  %v1596 = vld [vmem:[#allocation3 + $0x28] sm:$0xff]
  %v1597 = vld [vmem:[#allocation3 + $0x30] sm:$0xff]
  %v1598 = vld [vmem:[#allocation3 + $0x38] sm:$0xff]
  %v1599 = vld [vmem:[%s5] sm:$0x1]
  %v1601 = vlaneseq
  %v1602 = vshrl.u32 %v1601, 7
  %v1603 = vsub.s32 0, %v1602
  %v1604 = vrot.slane %v1599, %v1603
  %v1606 = vmul.f32 %v1591, %v1604
  %v1607 = vmul.f32 %v1592, %v1604
  %v1608 = vmul.f32 %v1593, %v1604
  %v1609 = vmul.f32 %v1594, %v1604
  %v1610 = vmul.f32 %v1595, %v1604
  %v1611 = vmul.f32 %v1596, %v1604
  %v1612 = vmul.f32 %v1597, %v1604
  %v1613 = vmul.f32 %v1598, %v1604
  %1614 = vadd.xlane.f32.xlu0 %v1606
  %v1615 = vpop.xlane.xlu0 %1614
  %1616 = vadd.xlane.f32.xlu0 %v1607
  %v1617 = vpop.xlane.xlu0 %1616
  %1618 = vadd.xlane.f32.xlu0 %v1608
  %v1619 = vpop.xlane.xlu0 %1618
  %1620 = vadd.xlane.f32.xlu0 %v1609
  %v1621 = vpop.xlane.xlu0 %1620
  %1622 = vadd.xlane.f32.xlu0 %v1610
  %v1623 = vpop.xlane.xlu0 %1622
  %1624 = vadd.xlane.f32.xlu0 %v1611
  %v1625 = vpop.xlane.xlu0 %1624
  %1626 = vadd.xlane.f32.xlu0 %v1612
  %v1627 = vpop.xlane.xlu0 %1626
  %1628 = vadd.xlane.f32.xlu0 %v1613
  %v1629 = vpop.xlane.xlu0 %1628
  %s1630 = sld [smem:[#allocation4]]
  %v1631 = vstv %s1630
  %v1632 = vadd.f32 %v1615, %v1631
  %v1633 = vadd.f32 %v1617, %v1631
  %v1634 = vadd.f32 %v1619, %v1631
  %v1635 = vadd.f32 %v1621, %v1631
  %v1636 = vadd.f32 %v1623, %v1631
  %v1637 = vadd.f32 %v1625, %v1631
  %v1638 = vadd.f32 %v1627, %v1631
  %v1639 = vadd.f32 %v1629, %v1631
  %v1640 = vmax.f32 %v1632, 0.0
  %v1641 = vmax.f32 %v1633, 0.0
  %v1642 = vmax.f32 %v1634, 0.0
  %v1643 = vmax.f32 %v1635, 0.0
  %v1644 = vmax.f32 %v1636, 0.0
  %v1645 = vmax.f32 %v1637, 0.0
  %v1646 = vmax.f32 %v1638, 0.0
  %v1647 = vmax.f32 %v1639, 0.0
  %v1648 = vld [vmem:[%s0] sm:$0xff]
  %v1649 = vld [vmem:[%s0 + $0x8] sm:$0xff]
  %v1650 = vld [vmem:[%s0 + $0x10] sm:$0xff]
  %v1651 = vld [vmem:[%s0 + $0x18] sm:$0xff]
  %v1652 = vld [vmem:[%s0 + $0x20] sm:$0xff]
  %v1653 = vld [vmem:[%s0 + $0x28] sm:$0xff]
  %v1654 = vld [vmem:[%s0 + $0x30] sm:$0xff]
  %v1655 = vld [vmem:[%s0 + $0x38] sm:$0xff]
  %v1656 = vmin.f32 %v1640, %v1648
  %v1657 = vmin.f32 %v1641, %v1649
  %v1658 = vmin.f32 %v1642, %v1650
  %v1659 = vmin.f32 %v1643, %v1651
  %v1660 = vmin.f32 %v1644, %v1652
  %v1661 = vmin.f32 %v1645, %v1653
  %v1662 = vmin.f32 %v1646, %v1654
  %v1663 = vmin.f32 %v1647, %v1655
  %1664 = vst.msk [vmem:[%s7] sm:$0xff] %vm58, %v1656
  %1665 = vst.msk [vmem:[%s7 + $0x8] sm:$0xff] %vm58, %v1657
  %1666 = vst.msk [vmem:[%s7 + $0x10] sm:$0xff] %vm58, %v1658
  %1667 = vst.msk [vmem:[%s7 + $0x18] sm:$0xff] %vm58, %v1659
  %1668 = vst.msk [vmem:[%s7 + $0x20] sm:$0xff] %vm58, %v1660
  %1669 = vst.msk [vmem:[%s7 + $0x28] sm:$0xff] %vm58, %v1661
  %1670 = vst.msk [vmem:[%s7 + $0x30] sm:$0xff] %vm58, %v1662
  %1671 = vst.msk [vmem:[%s7 + $0x38] sm:$0xff] %vm58, %v1663
  // Predicated region
  $region30: #{custom_rnn_forward.1} parent=0 // pred_check
    _
  $region31: #{custom_rnn_forward.1} parent=0 // pred_check_branch
    %1673 = sbr.rel (0) target = $region33
  $region32: #{custom_rnn_forward.1} parent=0 // pred_region
    _
  $region33: #{custom_rnn_forward.1} parent=0 // pred_fallthru
    _
  // Predicated region
  $region34: #{custom_rnn_forward.1} parent=0 // pred_check
    _
  $region35: #{custom_rnn_forward.1} parent=0 // pred_check_branch
    %1675 = sbr.rel (0) target = $region37
  $region36: #{custom_rnn_forward.1} parent=0 // pred_region
    _
  $region37: #{custom_rnn_forward.1} parent=0 // pred_fallthru
    _

</llo_original>
